<compile_context>
chip_gen: v7x
topology: tpu7x:2x2x1
jax: 0.10.0
libtpu: 0.0.40
codegen_flags: <defaults>
</compile_context>

<pallas_src>
import functools

import jax
import jax.numpy as jnp
from jax import lax
from jax.experimental import pallas as pl
from jax.experimental.pallas import tpu as pltpu


def _layernorm(x, gamma, beta, eps=1e-5):
    mean = jnp.mean(x, axis=-1, keepdims=True)
    var = jnp.mean((x - mean) ** 2, axis=-1, keepdims=True)
    return (x - mean) * lax.rsqrt(var + eps) * gamma + beta


def _gelu_exact(x):
    # PyTorch nn.GELU() default (erf-based, exact) in f32.
    return 0.5 * x * (1.0 + lax.erf(x * jnp.float32(0.7071067811865476)))


def vit_block_kernel(num_heads, seq_len,
                     x_ref, wqkv_ref, bqkv_ref, wo_ref, bo_ref,
                     g1_ref, be1_ref, w1_ref, bf1_ref, w2_ref, bf2_ref,
                     g2_ref, be2_ref, out_ref, attn_cat_ref):
    x_bf = x_ref[0]                            # (Sp, E) bf16 (bf16 input DMA)
    Sp, E = x_bf.shape
    x = x_bf.astype(jnp.float32)               # f32 residual / LayerNorm path
    H = num_heads
    Dh = E // H

    # Head-group size: as many heads as fit one 128-lane tile, and dividing H,
    # so every write into the concat scratch is a lane-dense (Sp, G*Dh) chunk.
    g_size = max(1, min(H, max(1, 128 // Dh)))
    while H % g_size:
        g_size -= 1
    n_groups = H // g_size
    gdh = g_size * Dh

    # ---- QKV projection (1/sqrt(Dh) already folded into the q columns) ----
    # Single bf16 copy of the activations; the f32 result only lives through
    # the bias add.
    qkv_bf = (jnp.dot(x_bf, wqkv_ref[...], preferred_element_type=jnp.float32)
              + bqkv_ref[...]).astype(jnp.bfloat16)            # (Sp, 3E)

    # Additive key mask for padded sequence positions (static: only if padded).
    if seq_len != Sp:
        key_ids = lax.broadcasted_iota(jnp.int32, (1, Sp), 1)
        key_mask = jnp.where(key_ids < seq_len, 0.0, -1e30).astype(jnp.float32)
    else:
        key_mask = None

    # ---- multihead self-attention (q = k = v = x) ----
    # Heads are iterated in groups; each group's outputs are written into the
    # bf16 VMEM scratch as one lane-dense chunk at its column offset, so the
    # output projection below is a single full-K matmul (no lane-dim concat
    # over all heads, no masked per-head stores).
    for g in range(n_groups):
        outs = []
        for j in range(g_size):
            h = g * g_size + j
            qh = qkv_bf[:, h * Dh:(h + 1) * Dh]                      # (Sp, Dh)
            kh = qkv_bf[:, E + h * Dh:E + (h + 1) * Dh]              # (Sp, Dh)
            vh = qkv_bf[:, 2 * E + h * Dh:2 * E + (h + 1) * Dh]      # (Sp, Dh)

            # q @ k^T via dot_general contracting Dh with Dh (no in-kernel .T).
            s = lax.dot_general(qh, kh, (((1,), (1,)), ((), ())),
                                preferred_element_type=jnp.float32)  # (Sp, Sp)
            if key_mask is not None:
                s = s + key_mask
            s = s - jnp.max(s, axis=-1, keepdims=True)
            p = jnp.exp(s)
            denom = jnp.sum(p, axis=-1, keepdims=True)
            p = p * pl.reciprocal(denom, approx=True)                # EUP, not VALU

            outs.append(
                jnp.dot(p.astype(jnp.bfloat16), vh,
                        preferred_element_type=jnp.float32).astype(jnp.bfloat16))

        chunk = outs[0] if g_size == 1 else jnp.concatenate(outs, axis=-1)
        attn_cat_ref[:, g * gdh:(g + 1) * gdh] = chunk               # (Sp, gdh) bf16

    attn = jnp.dot(attn_cat_ref[...], wo_ref[...],
                   preferred_element_type=jnp.float32) + bo_ref[...]

    # dropout(attn) is identity in eval mode
    x1 = _layernorm(x + attn, g1_ref[...], be1_ref[...])

    # ---- FFN: Linear(E, 4E) -> GELU -> (Dropout) -> Linear(4E, E) ----
    h1 = jnp.dot(x1.astype(jnp.bfloat16), w1_ref[...],
                 preferred_element_type=jnp.float32) + bf1_ref[...]
    h1 = _gelu_exact(h1)
    ffn = jnp.dot(h1.astype(jnp.bfloat16), w2_ref[...],
                  preferred_element_type=jnp.float32) + bf2_ref[...]

    # dropout(ffn) is identity in eval mode
    x2 = _layernorm(x1 + ffn, g2_ref[...], be2_ref[...])
    out_ref[0] = x2.astype(out_ref.dtype)


def vit_block(x_sbe, params, num_heads):
    """x_sbe: (S, B, E), params: dict of PyTorch-convention weights."""
    S, B, E = x_sbe.shape
    H = num_heads
    Dh = E // H
    Sp = ((S + 15) // 16) * 16                 # bf16-native (16,128) sublane packing

    # bf16 input DMA (halves the per-step (1,Sp,E) transfer); f32 math happens
    # inside the kernel where LayerNorm/softmax need it.
    x_bse = jnp.transpose(x_sbe, (1, 0, 2)).astype(jnp.bfloat16)     # (B, S, E)
    if Sp != S:
        x_bse = jnp.pad(x_bse, ((0, 0), (0, Sp - S), (0, 0)))

    # Wrapper-side weight prep (glue, not hot path):
    #  - transpose so the kernel does plain x @ W + b,
    #  - fold the 1/sqrt(Dh) attention scale into the q slice of the QKV proj,
    #  - cast matmul weights to bf16 (f32 accumulation happens in the kernel).
    scale = 1.0 / (Dh ** 0.5)
    wqkv_t = params["in_proj_weight"].T                       # (E, 3E)
    wqkv_t = wqkv_t.at[:, :E].multiply(scale)
    bqkv = params["in_proj_bias"].at[:E].multiply(scale)

    wqkv_bf = wqkv_t.astype(jnp.bfloat16)                     # (E, 3E)
    wo_bf = params["out_proj_weight"].T.astype(jnp.bfloat16)  # (E, E)
    w1_bf = params["ffn_w1"].T.astype(jnp.bfloat16)           # (E, 4E)
    w2_bf = params["ffn_w2"].T.astype(jnp.bfloat16)           # (4E, E)

    bqkv = bqkv[None, :].astype(jnp.float32)                  # (1, 3E)
    bo = params["out_proj_bias"][None, :].astype(jnp.float32)
    g1 = params["norm1_weight"][None, :].astype(jnp.float32)
    be1 = params["norm1_bias"][None, :].astype(jnp.float32)
    bf1 = params["ffn_b1"][None, :].astype(jnp.float32)
    bf2 = params["ffn_b2"][None, :].astype(jnp.float32)
    g2 = params["norm2_weight"][None, :].astype(jnp.float32)
    be2 = params["norm2_bias"][None, :].astype(jnp.float32)

    def const(shape):
        # Grid-invariant operand: constant index_map => fetched once; Buffered(1)
        # removes the default double-buffer reservation (~half the weight VMEM).
        n = len(shape)
        return pl.BlockSpec(shape, lambda b, _n=n: (0,) * _n,
                            pipeline_mode=pl.Buffered(1))

    # VMEM budget: single-buffered bf16 weights + f32/bf16 activations/scratch,
    # with slack; clamped to the actual per-generation VMEM capacity (v7x has
    # only 64 MiB per TensorCore) minus headroom.
    weight_bytes = (E * 3 * E + E * E + E * 4 * E + 4 * E * E) * 2   # bf16, Buffered(1)
    act_bytes = (2 * Sp * E * 2            # x block (bf16, double-buffered)
                 + 2 * Sp * E * 4          # out block (f32, double-buffered)
                 + Sp * 3 * E * 6          # qkv (transient f32 + bf16 copy)
                 + Sp * E * 2              # attention-concat scratch (bf16)
                 + Sp * 4 * E * 6          # ffn hidden (f32 + bf16 copy)
                 + 8 * Sp * Sp * 4         # in-flight score / prob tiles
                 + 4 * Sp * E * 4)         # residual / layernorm temporaries
    vmem_need = int(1.3 * (weight_bytes + act_bytes))
    try:
        vmem_cap = int(pltpu.get_tpu_info().vmem_capacity_bytes)
    except Exception:
        vmem_cap = 64 * 1024 * 1024        # conservative (fits every generation)
    vmem_limit = min(max(32 * 1024 * 1024, vmem_need),
                     vmem_cap - 4 * 1024 * 1024)

    out = pl.pallas_call(
        functools.partial(vit_block_kernel, H, S),
        out_shape=jax.ShapeDtypeStruct((B, Sp, E), x_sbe.dtype),
        grid_spec=pltpu.PrefetchScalarGridSpec(
            num_scalar_prefetch=0,
            grid=(B,),
            in_specs=[
                pl.BlockSpec((1, Sp, E), lambda b: (b, 0, 0)),   # x (bf16)
                const((E, 3 * E)), const((1, 3 * E)),            # qkv proj (bf16 W, f32 b)
                const((E, E)), const((1, E)),                    # out proj
                const((1, E)), const((1, E)),                    # norm1
                const((E, 4 * E)), const((1, 4 * E)),            # ffn W1
                const((4 * E, E)), const((1, E)),                # ffn W2
                const((1, E)), const((1, E)),                    # norm2
            ],
            out_specs=pl.BlockSpec((1, Sp, E), lambda b: (b, 0, 0)),
            scratch_shapes=[pltpu.VMEM((Sp, E), jnp.bfloat16)],  # head-concat buffer
        ),
        compiler_params=pltpu.CompilerParams(
            dimension_semantics=("parallel",),
            vmem_limit_bytes=vmem_limit,
        ),
    )(x_bse, wqkv_bf, bqkv, wo_bf, bo, g1, be1, w1_bf, bf1, w2_bf, bf2, g2, be2)

    out = out[:, :S, :]                         # drop padded rows
    return jnp.transpose(out, (1, 0, 2))        # back to (S, B, E)


def vit_block_ref(x_sbe, params, num_heads):
    """Pure-JAX f32 reference of the PyTorch VitBlock forward (eval mode)."""
    S, B, E = x_sbe.shape
    H = num_heads
    Dh = E // H
    x = jnp.transpose(x_sbe, (1, 0, 2))                        # (B, S, E)
    qkv = x @ params["in_proj_weight"].T + params["in_proj_bias"]
    q, k, v = qkv[..., :E], qkv[..., E:2 * E], qkv[..., 2 * E:]

    def split(t):
        return t.reshape(B, S, H, Dh).transpose(0, 2, 1, 3)    # (B, H, S, Dh)

    q, k, v = split(q), split(k), split(v)
    s = jnp.einsum("bhqd,bhkd->bhqk", q, k) / (Dh ** 0.5)
    p = jax.nn.softmax(s, axis=-1)
    o = jnp.einsum("bhqk,bhkd->bhqd", p, v).transpose(0, 2, 1, 3).reshape(B, S, E)
    attn = o @ params["out_proj_weight"].T + params["out_proj_bias"]

    def ln(t, g, b):
        m = t.mean(-1, keepdims=True)
        var = ((t - m) ** 2).mean(-1, keepdims=True)
        return (t - m) / jnp.sqrt(var + 1e-5) * g + b

    x1 = ln(x + attn, params["norm1_weight"], params["norm1_bias"])
    h = x1 @ params["ffn_w1"].T + params["ffn_b1"]
    h = 0.5 * h * (1.0 + lax.erf(h * jnp.float32(0.7071067811865476)))
    ffn = h @ params["ffn_w2"].T + params["ffn_b2"]
    x2 = ln(x1 + ffn, params["norm2_weight"], params["norm2_bias"])
    return jnp.transpose(x2, (1, 0, 2))


def init_params(key, embedding_dim):
    E = embedding_dim
    ks = jax.random.split(key, 6)
    std = 0.02
    return {
        "in_proj_weight": std * jax.random.normal(ks[0], (3 * E, E), jnp.float32),
        "in_proj_bias": jnp.zeros((3 * E,), jnp.float32),
        "out_proj_weight": std * jax.random.normal(ks[1], (E, E), jnp.float32),
        "out_proj_bias": jnp.zeros((E,), jnp.float32),
        "norm1_weight": jnp.ones((E,), jnp.float32),
        "norm1_bias": jnp.zeros((E,), jnp.float32),
        "ffn_w1": std * jax.random.normal(ks[2], (4 * E, E), jnp.float32),
        "ffn_b1": jnp.zeros((4 * E,), jnp.float32),
        "ffn_w2": std * jax.random.normal(ks[3], (E, 4 * E), jnp.float32),
        "ffn_b2": jnp.zeros((E,), jnp.float32),
        "norm2_weight": jnp.ones((E,), jnp.float32),
        "norm2_bias": jnp.zeros((E,), jnp.float32),
    }


if __name__ == "__main__":
    S, B, E, H = 8, 2, 32, 4        # seq, batch, embedding_dim, num_heads
    key = jax.random.PRNGKey(0)
    kx, kp = jax.random.split(key)
    x = jax.random.normal(kx, (S, B, E), jnp.float32)   # (S, B, E) like PyTorch MHA
    params = init_params(kp, E)

    y = vit_block(x, params, num_heads=H)
    jax.block_until_ready(y)
    assert y.shape == (S, B, E)
    assert bool(jnp.all(jnp.isfinite(y)))

    # bf16 matmul feeds / bf16 input DMA / approx reciprocal => loose tolerance.
    y_ref = vit_block_ref(x, params, num_heads=H)
    max_abs_err = float(jnp.max(jnp.abs(y - y_ref)))
    assert max_abs_err < 0.25, f"max abs err {max_abs_err}"

    print("KERNEL_OK")
</pallas_src>

<mosaic_0001>
module attributes {stable_mosaic.version = 11 : i64} {
  func.func @vit_block_kernel(%arg0: i32, %arg1: memref<1x16x32xbf16, #tpu.memory_space<vmem>>, %arg2: memref<32x96xbf16, #tpu.memory_space<vmem>>, %arg3: memref<1x96xf32, #tpu.memory_space<vmem>>, %arg4: memref<32x32xbf16, #tpu.memory_space<vmem>>, %arg5: memref<1x32xf32, #tpu.memory_space<vmem>>, %arg6: memref<1x32xf32, #tpu.memory_space<vmem>>, %arg7: memref<1x32xf32, #tpu.memory_space<vmem>>, %arg8: memref<32x128xbf16, #tpu.memory_space<vmem>>, %arg9: memref<1x128xf32, #tpu.memory_space<vmem>>, %arg10: memref<128x32xbf16, #tpu.memory_space<vmem>>, %arg11: memref<1x32xf32, #tpu.memory_space<vmem>>, %arg12: memref<1x32xf32, #tpu.memory_space<vmem>>, %arg13: memref<1x32xf32, #tpu.memory_space<vmem>>, %arg14: memref<1x16x32xf32, #tpu.memory_space<vmem>>, %arg15: memref<16x32xbf16, #tpu.memory_space<vmem>>) attributes {dimension_semantics = [#tpu.dimension_semantics<parallel>], iteration_bounds = array<i64: 2>, scalar_prefetch = 0 : i64, scratch_operands = 1 : i64, tpu.core_type = #tpu.core_type<tc>, window_params = [{transform_indices = @transform_0, window_bounds = array<i64: 1, 16, 32>}, {pipeline_mode = #tpu.pipeline_mode<synchronous>, transform_indices = @transform_1, window_bounds = array<i64: 32, 96>}, {pipeline_mode = #tpu.pipeline_mode<synchronous>, transform_indices = @transform_2, window_bounds = array<i64: 1, 96>}, {pipeline_mode = #tpu.pipeline_mode<synchronous>, transform_indices = @transform_3, window_bounds = array<i64: 32, 32>}, {pipeline_mode = #tpu.pipeline_mode<synchronous>, transform_indices = @transform_4, window_bounds = array<i64: 1, 32>}, {pipeline_mode = #tpu.pipeline_mode<synchronous>, transform_indices = @transform_5, window_bounds = array<i64: 1, 32>}, {pipeline_mode = #tpu.pipeline_mode<synchronous>, transform_indices = @transform_6, window_bounds = array<i64: 1, 32>}, {pipeline_mode = #tpu.pipeline_mode<synchronous>, transform_indices = @transform_7, window_bounds = array<i64: 32, 128>}, {pipeline_mode = #tpu.pipeline_mode<synchronous>, transform_indices = @transform_8, window_bounds = array<i64: 1, 128>}, {pipeline_mode = #tpu.pipeline_mode<synchronous>, transform_indices = @transform_9, window_bounds = array<i64: 128, 32>}, {pipeline_mode = #tpu.pipeline_mode<synchronous>, transform_indices = @transform_10, window_bounds = array<i64: 1, 32>}, {pipeline_mode = #tpu.pipeline_mode<synchronous>, transform_indices = @transform_11, window_bounds = array<i64: 1, 32>}, {pipeline_mode = #tpu.pipeline_mode<synchronous>, transform_indices = @transform_12, window_bounds = array<i64: 1, 32>}, {transform_indices = @transform_13, window_bounds = array<i64: 1, 16, 32>}]} {
    %c0 = arith.constant 0 : index
    %c0_0 = arith.constant 0 : index
    %c0_1 = arith.constant 0 : index
    %0 = vector.load %arg1[%c0, %c0_0, %c0_1] : memref<1x16x32xbf16, #tpu.memory_space<vmem>>, vector<1x16x32xbf16>
    %1 = vector.shape_cast %0 : vector<1x16x32xbf16> to vector<16x32xbf16>
    %2 = arith.extf %1 : vector<16x32xbf16> to vector<16x32xf32>
    %c0_2 = arith.constant 0 : index
    %c0_3 = arith.constant 0 : index
    %3 = vector.load %arg2[%c0_2, %c0_3] : memref<32x96xbf16, #tpu.memory_space<vmem>>, vector<32x96xbf16>
    %cst = arith.constant dense<0.000000e+00> : vector<16x96xf32>
    %4 = tpu.matmul %1, %3, %cst {dimension_numbers = #tpu.dot_dimension_numbers<[1], [0], [0], [1], [0, 0, 1, 1], [], []>} : vector<16x32xbf16>, vector<32x96xbf16>, vector<16x96xf32> -> vector<16x96xf32>
    %c0_4 = arith.constant 0 : index
    %c0_5 = arith.constant 0 : index
    %5 = vector.load %arg3[%c0_4, %c0_5] : memref<1x96xf32, #tpu.memory_space<vmem>>, vector<1x96xf32>
    %6 = vector.broadcast %5 : vector<1x96xf32> to vector<16x96xf32>
    %7 = arith.addf %4, %6 : vector<16x96xf32>
    %8 = arith.truncf %7 : vector<16x96xf32> to vector<16x96xbf16>
    %9 = tpu.iota {dimensions = array<i32: 1>} : vector<1x16xi32>
    %c8_i32 = arith.constant 8 : i32
    %10 = vector.broadcast %c8_i32 : i32 to vector<1x16xi32>
    %11 = arith.cmpi slt, %9, %10 : vector<1x16xi32>
    %cst_6 = arith.constant 0.000000e+00 : f32
    %cst_7 = arith.constant -1.000000e+30 : f32
    %12 = vector.broadcast %cst_6 : f32 to vector<1x16xf32>
    %13 = vector.broadcast %cst_7 : f32 to vector<1x16xf32>
    %14 = arith.select %11, %12, %13 : vector<1x16xi1>, vector<1x16xf32>
    %15 = vector.extract_strided_slice %8 {offsets = [0, 0], sizes = [16, 8], strides = [1, 1]} : vector<16x96xbf16> to vector<16x8xbf16>
    %16 = vector.extract_strided_slice %8 {offsets = [0, 32], sizes = [16, 8], strides = [1, 1]} : vector<16x96xbf16> to vector<16x8xbf16>
    %17 = vector.extract_strided_slice %8 {offsets = [0, 64], sizes = [16, 8], strides = [1, 1]} : vector<16x96xbf16> to vector<16x8xbf16>
    %cst_8 = arith.constant dense<0.000000e+00> : vector<16x16xf32>
    %18 = tpu.matmul %15, %16, %cst_8 {dimension_numbers = #tpu.dot_dimension_numbers<[1], [1], [0], [0], [0, 0, 1, 0], [], []>} : vector<16x8xbf16>, vector<16x8xbf16>, vector<16x16xf32> -> vector<16x16xf32>
    %19 = vector.broadcast %14 : vector<1x16xf32> to vector<16x16xf32>
    %20 = arith.addf %18, %19 : vector<16x16xf32>
    %cst_9 = arith.constant dense<0xFF800000> : vector<16xf32>
    %21 = vector.multi_reduction <maximumf>, %20, %cst_9 [1] : vector<16x16xf32> to vector<16xf32>
    %22 = vector.shape_cast %21 : vector<16xf32> to vector<16x1xf32>
    %23 = vector.broadcast %22 : vector<16x1xf32> to vector<16x16xf32>
    %24 = arith.subf %20, %23 : vector<16x16xf32>
    %25 = math.exp %24 : vector<16x16xf32>
    %cst_10 = arith.constant dense<0.000000e+00> : vector<16xf32>
    %26 = vector.multi_reduction <add>, %25, %cst_10 [1] : vector<16x16xf32> to vector<16xf32>
    %27 = vector.shape_cast %26 : vector<16xf32> to vector<16x1xf32>
    %28 = tpu.reciprocal %27 {approx = true} : vector<16x1xf32> -> vector<16x1xf32>
    %29 = vector.broadcast %28 : vector<16x1xf32> to vector<16x16xf32>
    %30 = arith.mulf %25, %29 : vector<16x16xf32>
    %31 = arith.truncf %30 : vector<16x16xf32> to vector<16x16xbf16>
    %cst_11 = arith.constant dense<0.000000e+00> : vector<16x8xf32>
    %32 = tpu.matmul %31, %17, %cst_11 {dimension_numbers = #tpu.dot_dimension_numbers<[1], [0], [0], [1], [0, 0, 1, 1], [], []>} : vector<16x16xbf16>, vector<16x8xbf16>, vector<16x8xf32> -> vector<16x8xf32>
    %33 = arith.truncf %32 : vector<16x8xf32> to vector<16x8xbf16>
    %34 = vector.extract_strided_slice %8 {offsets = [0, 8], sizes = [16, 8], strides = [1, 1]} : vector<16x96xbf16> to vector<16x8xbf16>
    %35 = vector.extract_strided_slice %8 {offsets = [0, 40], sizes = [16, 8], strides = [1, 1]} : vector<16x96xbf16> to vector<16x8xbf16>
    %36 = vector.extract_strided_slice %8 {offsets = [0, 72], sizes = [16, 8], strides = [1, 1]} : vector<16x96xbf16> to vector<16x8xbf16>
    %cst_12 = arith.constant dense<0.000000e+00> : vector<16x16xf32>
    %37 = tpu.matmul %34, %35, %cst_12 {dimension_numbers = #tpu.dot_dimension_numbers<[1], [1], [0], [0], [0, 0, 1, 0], [], []>} : vector<16x8xbf16>, vector<16x8xbf16>, vector<16x16xf32> -> vector<16x16xf32>
    %38 = vector.broadcast %14 : vector<1x16xf32> to vector<16x16xf32>
    %39 = arith.addf %37, %38 : vector<16x16xf32>
    %cst_13 = arith.constant dense<0xFF800000> : vector<16xf32>
    %40 = vector.multi_reduction <maximumf>, %39, %cst_13 [1] : vector<16x16xf32> to vector<16xf32>
    %41 = vector.shape_cast %40 : vector<16xf32> to vector<16x1xf32>
    %42 = vector.broadcast %41 : vector<16x1xf32> to vector<16x16xf32>
    %43 = arith.subf %39, %42 : vector<16x16xf32>
    %44 = math.exp %43 : vector<16x16xf32>
    %cst_14 = arith.constant dense<0.000000e+00> : vector<16xf32>
    %45 = vector.multi_reduction <add>, %44, %cst_14 [1] : vector<16x16xf32> to vector<16xf32>
    %46 = vector.shape_cast %45 : vector<16xf32> to vector<16x1xf32>
    %47 = tpu.reciprocal %46 {approx = true} : vector<16x1xf32> -> vector<16x1xf32>
    %48 = vector.broadcast %47 : vector<16x1xf32> to vector<16x16xf32>
    %49 = arith.mulf %44, %48 : vector<16x16xf32>
    %50 = arith.truncf %49 : vector<16x16xf32> to vector<16x16xbf16>
    %cst_15 = arith.constant dense<0.000000e+00> : vector<16x8xf32>
    %51 = tpu.matmul %50, %36, %cst_15 {dimension_numbers = #tpu.dot_dimension_numbers<[1], [0], [0], [1], [0, 0, 1, 1], [], []>} : vector<16x16xbf16>, vector<16x8xbf16>, vector<16x8xf32> -> vector<16x8xf32>
    %52 = arith.truncf %51 : vector<16x8xf32> to vector<16x8xbf16>
    %53 = vector.extract_strided_slice %8 {offsets = [0, 16], sizes = [16, 8], strides = [1, 1]} : vector<16x96xbf16> to vector<16x8xbf16>
    %54 = vector.extract_strided_slice %8 {offsets = [0, 48], sizes = [16, 8], strides = [1, 1]} : vector<16x96xbf16> to vector<16x8xbf16>
    %55 = vector.extract_strided_slice %8 {offsets = [0, 80], sizes = [16, 8], strides = [1, 1]} : vector<16x96xbf16> to vector<16x8xbf16>
    %cst_16 = arith.constant dense<0.000000e+00> : vector<16x16xf32>
    %56 = tpu.matmul %53, %54, %cst_16 {dimension_numbers = #tpu.dot_dimension_numbers<[1], [1], [0], [0], [0, 0, 1, 0], [], []>} : vector<16x8xbf16>, vector<16x8xbf16>, vector<16x16xf32> -> vector<16x16xf32>
    %57 = vector.broadcast %14 : vector<1x16xf32> to vector<16x16xf32>
    %58 = arith.addf %56, %57 : vector<16x16xf32>
    %cst_17 = arith.constant dense<0xFF800000> : vector<16xf32>
    %59 = vector.multi_reduction <maximumf>, %58, %cst_17 [1] : vector<16x16xf32> to vector<16xf32>
    %60 = vector.shape_cast %59 : vector<16xf32> to vector<16x1xf32>
    %61 = vector.broadcast %60 : vector<16x1xf32> to vector<16x16xf32>
    %62 = arith.subf %58, %61 : vector<16x16xf32>
    %63 = math.exp %62 : vector<16x16xf32>
    %cst_18 = arith.constant dense<0.000000e+00> : vector<16xf32>
    %64 = vector.multi_reduction <add>, %63, %cst_18 [1] : vector<16x16xf32> to vector<16xf32>
    %65 = vector.shape_cast %64 : vector<16xf32> to vector<16x1xf32>
    %66 = tpu.reciprocal %65 {approx = true} : vector<16x1xf32> -> vector<16x1xf32>
    %67 = vector.broadcast %66 : vector<16x1xf32> to vector<16x16xf32>
    %68 = arith.mulf %63, %67 : vector<16x16xf32>
    %69 = arith.truncf %68 : vector<16x16xf32> to vector<16x16xbf16>
    %cst_19 = arith.constant dense<0.000000e+00> : vector<16x8xf32>
    %70 = tpu.matmul %69, %55, %cst_19 {dimension_numbers = #tpu.dot_dimension_numbers<[1], [0], [0], [1], [0, 0, 1, 1], [], []>} : vector<16x16xbf16>, vector<16x8xbf16>, vector<16x8xf32> -> vector<16x8xf32>
    %71 = arith.truncf %70 : vector<16x8xf32> to vector<16x8xbf16>
    %72 = vector.extract_strided_slice %8 {offsets = [0, 24], sizes = [16, 8], strides = [1, 1]} : vector<16x96xbf16> to vector<16x8xbf16>
    %73 = vector.extract_strided_slice %8 {offsets = [0, 56], sizes = [16, 8], strides = [1, 1]} : vector<16x96xbf16> to vector<16x8xbf16>
    %74 = vector.extract_strided_slice %8 {offsets = [0, 88], sizes = [16, 8], strides = [1, 1]} : vector<16x96xbf16> to vector<16x8xbf16>
    %cst_20 = arith.constant dense<0.000000e+00> : vector<16x16xf32>
    %75 = tpu.matmul %72, %73, %cst_20 {dimension_numbers = #tpu.dot_dimension_numbers<[1], [1], [0], [0], [0, 0, 1, 0], [], []>} : vector<16x8xbf16>, vector<16x8xbf16>, vector<16x16xf32> -> vector<16x16xf32>
    %76 = vector.broadcast %14 : vector<1x16xf32> to vector<16x16xf32>
    %77 = arith.addf %75, %76 : vector<16x16xf32>
    %cst_21 = arith.constant dense<0xFF800000> : vector<16xf32>
    %78 = vector.multi_reduction <maximumf>, %77, %cst_21 [1] : vector<16x16xf32> to vector<16xf32>
    %79 = vector.shape_cast %78 : vector<16xf32> to vector<16x1xf32>
    %80 = vector.broadcast %79 : vector<16x1xf32> to vector<16x16xf32>
    %81 = arith.subf %77, %80 : vector<16x16xf32>
    %82 = math.exp %81 : vector<16x16xf32>
    %cst_22 = arith.constant dense<0.000000e+00> : vector<16xf32>
    %83 = vector.multi_reduction <add>, %82, %cst_22 [1] : vector<16x16xf32> to vector<16xf32>
    %84 = vector.shape_cast %83 : vector<16xf32> to vector<16x1xf32>
    %85 = tpu.reciprocal %84 {approx = true} : vector<16x1xf32> -> vector<16x1xf32>
    %86 = vector.broadcast %85 : vector<16x1xf32> to vector<16x16xf32>
    %87 = arith.mulf %82, %86 : vector<16x16xf32>
    %88 = arith.truncf %87 : vector<16x16xf32> to vector<16x16xbf16>
    %cst_23 = arith.constant dense<0.000000e+00> : vector<16x8xf32>
    %89 = tpu.matmul %88, %74, %cst_23 {dimension_numbers = #tpu.dot_dimension_numbers<[1], [0], [0], [1], [0, 0, 1, 1], [], []>} : vector<16x16xbf16>, vector<16x8xbf16>, vector<16x8xf32> -> vector<16x8xf32>
    %90 = arith.truncf %89 : vector<16x8xf32> to vector<16x8xbf16>
    %91 = tpu.concatenate %33, %52, %71, %90 in 1 : vector<16x8xbf16>, vector<16x8xbf16>, vector<16x8xbf16>, vector<16x8xbf16> -> vector<16x32xbf16>
    %c0_24 = arith.constant 0 : index
    %c0_25 = arith.constant 0 : index
    %92 = vector.load %arg15[%c0_24, %c0_25] : memref<16x32xbf16, #tpu.memory_space<vmem>>, vector<16x32xbf16>
    tpu.vector_store %arg15[%c0_24, %c0_25], %91 {strides = array<i32>} : memref<16x32xbf16, #tpu.memory_space<vmem>>, vector<16x32xbf16>,
    %c0_26 = arith.constant 0 : index
    %c0_27 = arith.constant 0 : index
    %93 = vector.load %arg15[%c0_26, %c0_27] : memref<16x32xbf16, #tpu.memory_space<vmem>>, vector<16x32xbf16>
    %c0_28 = arith.constant 0 : index
    %c0_29 = arith.constant 0 : index
    %94 = vector.load %arg4[%c0_28, %c0_29] : memref<32x32xbf16, #tpu.memory_space<vmem>>, vector<32x32xbf16>
    %cst_30 = arith.constant dense<0.000000e+00> : vector<16x32xf32>
    %95 = tpu.matmul %93, %94, %cst_30 {dimension_numbers = #tpu.dot_dimension_numbers<[1], [0], [0], [1], [0, 0, 1, 1], [], []>} : vector<16x32xbf16>, vector<32x32xbf16>, vector<16x32xf32> -> vector<16x32xf32>
    %c0_31 = arith.constant 0 : index
    %c0_32 = arith.constant 0 : index
    %96 = vector.load %arg5[%c0_31, %c0_32] : memref<1x32xf32, #tpu.memory_space<vmem>>, vector<1x32xf32>
    %97 = vector.broadcast %96 : vector<1x32xf32> to vector<16x32xf32>
    %98 = arith.addf %95, %97 : vector<16x32xf32>
    %99 = arith.addf %2, %98 : vector<16x32xf32>
    %c0_33 = arith.constant 0 : index
    %c0_34 = arith.constant 0 : index
    %100 = vector.load %arg6[%c0_33, %c0_34] : memref<1x32xf32, #tpu.memory_space<vmem>>, vector<1x32xf32>
    %c0_35 = arith.constant 0 : index
    %c0_36 = arith.constant 0 : index
    %101 = vector.load %arg7[%c0_35, %c0_36] : memref<1x32xf32, #tpu.memory_space<vmem>>, vector<1x32xf32>
    %cst_37 = arith.constant dense<0.000000e+00> : vector<16xf32>
    %102 = vector.multi_reduction <add>, %99, %cst_37 [1] : vector<16x32xf32> to vector<16xf32>
    %103 = vector.shape_cast %102 : vector<16xf32> to vector<16x1xf32>
    %cst_38 = arith.constant 3.200000e+01 : f32
    %104 = vector.broadcast %cst_38 : f32 to vector<16x1xf32>
    %105 = arith.divf %103, %104 : vector<16x1xf32>
    %106 = vector.broadcast %105 : vector<16x1xf32> to vector<16x32xf32>
    %107 = arith.subf %99, %106 : vector<16x32xf32>
    %108 = arith.mulf %107, %107 : vector<16x32xf32>
    %cst_39 = arith.constant dense<0.000000e+00> : vector<16xf32>
    %109 = vector.multi_reduction <add>, %108, %cst_39 [1] : vector<16x32xf32> to vector<16xf32>
    %110 = vector.shape_cast %109 : vector<16xf32> to vector<16x1xf32>
    %cst_40 = arith.constant 3.200000e+01 : f32
    %111 = vector.broadcast %cst_40 : f32 to vector<16x1xf32>
    %112 = arith.divf %110, %111 : vector<16x1xf32>
    %113 = vector.broadcast %105 : vector<16x1xf32> to vector<16x32xf32>
    %114 = arith.subf %99, %113 : vector<16x32xf32>
    %cst_41 = arith.constant 9.99999974E-6 : f32
    %115 = vector.broadcast %cst_41 : f32 to vector<16x1xf32>
    %116 = arith.addf %112, %115 : vector<16x1xf32>
    %117 = math.rsqrt %116 : vector<16x1xf32>
    %118 = vector.broadcast %117 : vector<16x1xf32> to vector<16x32xf32>
    %119 = arith.mulf %114, %118 : vector<16x32xf32>
    %120 = vector.broadcast %100 : vector<1x32xf32> to vector<16x32xf32>
    %121 = arith.mulf %119, %120 : vector<16x32xf32>
    %122 = vector.broadcast %101 : vector<1x32xf32> to vector<16x32xf32>
    %123 = arith.addf %121, %122 : vector<16x32xf32>
    %124 = arith.truncf %123 : vector<16x32xf32> to vector<16x32xbf16>
    %c0_42 = arith.constant 0 : index
    %c0_43 = arith.constant 0 : index
    %125 = vector.load %arg8[%c0_42, %c0_43] : memref<32x128xbf16, #tpu.memory_space<vmem>>, vector<32x128xbf16>
    %cst_44 = arith.constant dense<0.000000e+00> : vector<16x128xf32>
    %126 = tpu.matmul %124, %125, %cst_44 {dimension_numbers = #tpu.dot_dimension_numbers<[1], [0], [0], [1], [0, 0, 1, 1], [], []>} : vector<16x32xbf16>, vector<32x128xbf16>, vector<16x128xf32> -> vector<16x128xf32>
    %c0_45 = arith.constant 0 : index
    %c0_46 = arith.constant 0 : index
    %127 = vector.load %arg9[%c0_45, %c0_46] : memref<1x128xf32, #tpu.memory_space<vmem>>, vector<1x128xf32>
    %128 = vector.broadcast %127 : vector<1x128xf32> to vector<16x128xf32>
    %129 = arith.addf %126, %128 : vector<16x128xf32>
    %cst_47 = arith.constant 5.000000e-01 : f32
    %130 = vector.broadcast %cst_47 : f32 to vector<16x128xf32>
    %131 = arith.mulf %130, %129 : vector<16x128xf32>
    %cst_48 = arith.constant 0.707106769 : f32
    %132 = vector.broadcast %cst_48 : f32 to vector<16x128xf32>
    %133 = arith.mulf %129, %132 : vector<16x128xf32>
    %134 = math.erf %133 : vector<16x128xf32>
    %cst_49 = arith.constant 1.000000e+00 : f32
    %135 = vector.broadcast %cst_49 : f32 to vector<16x128xf32>
    %136 = arith.addf %135, %134 : vector<16x128xf32>
    %137 = arith.mulf %131, %136 : vector<16x128xf32>
    %138 = arith.truncf %137 : vector<16x128xf32> to vector<16x128xbf16>
    %c0_50 = arith.constant 0 : index
    %c0_51 = arith.constant 0 : index
    %139 = vector.load %arg10[%c0_50, %c0_51] : memref<128x32xbf16, #tpu.memory_space<vmem>>, vector<128x32xbf16>
    %cst_52 = arith.constant dense<0.000000e+00> : vector<16x32xf32>
    %140 = tpu.matmul %138, %139, %cst_52 {dimension_numbers = #tpu.dot_dimension_numbers<[1], [0], [0], [1], [0, 0, 1, 1], [], []>} : vector<16x128xbf16>, vector<128x32xbf16>, vector<16x32xf32> -> vector<16x32xf32>
    %c0_53 = arith.constant 0 : index
    %c0_54 = arith.constant 0 : index
    %141 = vector.load %arg11[%c0_53, %c0_54] : memref<1x32xf32, #tpu.memory_space<vmem>>, vector<1x32xf32>
    %142 = vector.broadcast %141 : vector<1x32xf32> to vector<16x32xf32>
    %143 = arith.addf %140, %142 : vector<16x32xf32>
    %144 = arith.addf %123, %143 : vector<16x32xf32>
    %c0_55 = arith.constant 0 : index
    %c0_56 = arith.constant 0 : index
    %145 = vector.load %arg12[%c0_55, %c0_56] : memref<1x32xf32, #tpu.memory_space<vmem>>, vector<1x32xf32>
    %c0_57 = arith.constant 0 : index
    %c0_58 = arith.constant 0 : index
    %146 = vector.load %arg13[%c0_57, %c0_58] : memref<1x32xf32, #tpu.memory_space<vmem>>, vector<1x32xf32>
    %cst_59 = arith.constant dense<0.000000e+00> : vector<16xf32>
    %147 = vector.multi_reduction <add>, %144, %cst_59 [1] : vector<16x32xf32> to vector<16xf32>
    %148 = vector.shape_cast %147 : vector<16xf32> to vector<16x1xf32>
    %cst_60 = arith.constant 3.200000e+01 : f32
    %149 = vector.broadcast %cst_60 : f32 to vector<16x1xf32>
    %150 = arith.divf %148, %149 : vector<16x1xf32>
    %151 = vector.broadcast %150 : vector<16x1xf32> to vector<16x32xf32>
    %152 = arith.subf %144, %151 : vector<16x32xf32>
    %153 = arith.mulf %152, %152 : vector<16x32xf32>
    %cst_61 = arith.constant dense<0.000000e+00> : vector<16xf32>
    %154 = vector.multi_reduction <add>, %153, %cst_61 [1] : vector<16x32xf32> to vector<16xf32>
    %155 = vector.shape_cast %154 : vector<16xf32> to vector<16x1xf32>
    %cst_62 = arith.constant 3.200000e+01 : f32
    %156 = vector.broadcast %cst_62 : f32 to vector<16x1xf32>
    %157 = arith.divf %155, %156 : vector<16x1xf32>
    %158 = vector.broadcast %150 : vector<16x1xf32> to vector<16x32xf32>
    %159 = arith.subf %144, %158 : vector<16x32xf32>
    %cst_63 = arith.constant 9.99999974E-6 : f32
    %160 = vector.broadcast %cst_63 : f32 to vector<16x1xf32>
    %161 = arith.addf %157, %160 : vector<16x1xf32>
    %162 = math.rsqrt %161 : vector<16x1xf32>
    %163 = vector.broadcast %162 : vector<16x1xf32> to vector<16x32xf32>
    %164 = arith.mulf %159, %163 : vector<16x32xf32>
    %165 = vector.broadcast %145 : vector<1x32xf32> to vector<16x32xf32>
    %166 = arith.mulf %164, %165 : vector<16x32xf32>
    %167 = vector.broadcast %146 : vector<1x32xf32> to vector<16x32xf32>
    %168 = arith.addf %166, %167 : vector<16x32xf32>
    %c0_64 = arith.constant 0 : index
    %c0_65 = arith.constant 0 : index
    %c0_66 = arith.constant 0 : index
    %169 = vector.load %arg14[%c0_64, %c0_65, %c0_66] : memref<1x16x32xf32, #tpu.memory_space<vmem>>, vector<1x16x32xf32>
    %170 = vector.shape_cast %169 : vector<1x16x32xf32> to vector<16x32xf32>
    %171 = vector.shape_cast %168 : vector<16x32xf32> to vector<1x16x32xf32>
    tpu.vector_store %arg14[%c0_64, %c0_65, %c0_66], %171 {strides = array<i32>} : memref<1x16x32xf32, #tpu.memory_space<vmem>>, vector<1x16x32xf32>,
    return
  }
  func.func @transform_0(%arg0: i32) -> (i32, i32, i32) {
    %c0_i32 = arith.constant 0 : i32
    %c0_i32_0 = arith.constant 0 : i32
    %c0_i32_1 = arith.constant 0 : i32
    return %arg0, %c0_i32, %c0_i32_0 : i32, i32, i32
  }
  func.func @transform_1(%arg0: i32) -> (i32, i32) {
    %c0_i32 = arith.constant 0 : i32
    %c0_i32_0 = arith.constant 0 : i32
    %c0_i32_1 = arith.constant 0 : i32
    return %c0_i32, %c0_i32_0 : i32, i32
  }
  func.func @transform_2(%arg0: i32) -> (i32, i32) {
    %c0_i32 = arith.constant 0 : i32
    %c0_i32_0 = arith.constant 0 : i32
    %c0_i32_1 = arith.constant 0 : i32
    return %c0_i32, %c0_i32_0 : i32, i32
  }
  func.func @transform_3(%arg0: i32) -> (i32, i32) {
    %c0_i32 = arith.constant 0 : i32
    %c0_i32_0 = arith.constant 0 : i32
    %c0_i32_1 = arith.constant 0 : i32
    return %c0_i32, %c0_i32_0 : i32, i32
  }
  func.func @transform_4(%arg0: i32) -> (i32, i32) {
    %c0_i32 = arith.constant 0 : i32
    %c0_i32_0 = arith.constant 0 : i32
    %c0_i32_1 = arith.constant 0 : i32
    return %c0_i32, %c0_i32_0 : i32, i32
  }
  func.func @transform_5(%arg0: i32) -> (i32, i32) {
    %c0_i32 = arith.constant 0 : i32
    %c0_i32_0 = arith.constant 0 : i32
    %c0_i32_1 = arith.constant 0 : i32
    return %c0_i32, %c0_i32_0 : i32, i32
  }
  func.func @transform_6(%arg0: i32) -> (i32, i32) {
    %c0_i32 = arith.constant 0 : i32
    %c0_i32_0 = arith.constant 0 : i32
    %c0_i32_1 = arith.constant 0 : i32
    return %c0_i32, %c0_i32_0 : i32, i32
  }
  func.func @transform_7(%arg0: i32) -> (i32, i32) {
    %c0_i32 = arith.constant 0 : i32
    %c0_i32_0 = arith.constant 0 : i32
    %c0_i32_1 = arith.constant 0 : i32
    return %c0_i32, %c0_i32_0 : i32, i32
  }
  func.func @transform_8(%arg0: i32) -> (i32, i32) {
    %c0_i32 = arith.constant 0 : i32
    %c0_i32_0 = arith.constant 0 : i32
    %c0_i32_1 = arith.constant 0 : i32
    return %c0_i32, %c0_i32_0 : i32, i32
  }
  func.func @transform_9(%arg0: i32) -> (i32, i32) {
    %c0_i32 = arith.constant 0 : i32
    %c0_i32_0 = arith.constant 0 : i32
    %c0_i32_1 = arith.constant 0 : i32
    return %c0_i32, %c0_i32_0 : i32, i32
  }
  func.func @transform_10(%arg0: i32) -> (i32, i32) {
    %c0_i32 = arith.constant 0 : i32
    %c0_i32_0 = arith.constant 0 : i32
    %c0_i32_1 = arith.constant 0 : i32
    return %c0_i32, %c0_i32_0 : i32, i32
  }
  func.func @transform_11(%arg0: i32) -> (i32, i32) {
    %c0_i32 = arith.constant 0 : i32
    %c0_i32_0 = arith.constant 0 : i32
    %c0_i32_1 = arith.constant 0 : i32
    return %c0_i32, %c0_i32_0 : i32, i32
  }
  func.func @transform_12(%arg0: i32) -> (i32, i32) {
    %c0_i32 = arith.constant 0 : i32
    %c0_i32_0 = arith.constant 0 : i32
    %c0_i32_1 = arith.constant 0 : i32
    return %c0_i32, %c0_i32_0 : i32, i32
  }
  func.func @transform_13(%arg0: i32) -> (i32, i32, i32) {
    %c0_i32 = arith.constant 0 : i32
    %c0_i32_0 = arith.constant 0 : i32
    %c0_i32_1 = arith.constant 0 : i32
    return %arg0, %c0_i32, %c0_i32_0 : i32, i32, i32
  }
}

</mosaic_0001>

<llo_original>
// kernel: tpu_custom_call.1
$region0: #{tpu_custom_call.1}
  #allocation0 [shape = 'u32[]', space=smem, size = 0x4, offset = 0x4, fixed_abs, tag = 'smem constant byte address 0x4 - core index']
  #allocation1 [shape = 'u32[144,128]{1,0:T(1,128)}', space=vmem, size = 0x12000, scoped, tag = 'internal scratch']
  #allocation2 [shape = 'bf16[16,32]{1,0:T(16,128)(2,1)}', space=vmem, size = 0x1000, scoped, tag = 'scratch operand']
  %s0 = inlined_call_operand.vmem [shape: bf16[2,16,32], index: 0, kind: input, shape index: {}]
  %s1 = inlined_call_operand.vmem [shape: bf16[32,96], index: 1, kind: input, shape index: {}]
  %s2 = inlined_call_operand.vmem [shape: f32[1,96], index: 2, kind: input, shape index: {}]
  %s3 = inlined_call_operand.vmem [shape: bf16[32,32], index: 3, kind: input, shape index: {}]
  %s4 = inlined_call_operand.vmem [shape: f32[1,32], index: 4, kind: input, shape index: {}]
  %s5 = inlined_call_operand.vmem [shape: f32[1,32], index: 5, kind: input, shape index: {}]
  %s6 = inlined_call_operand.vmem [shape: f32[1,32], index: 6, kind: input, shape index: {}]
  %s7 = inlined_call_operand.vmem [shape: bf16[32,128], index: 7, kind: input, shape index: {}]
  %s8 = inlined_call_operand.vmem [shape: f32[1,128], index: 8, kind: input, shape index: {}]
  %s9 = inlined_call_operand.vmem [shape: bf16[128,32], index: 9, kind: input, shape index: {}]
  %s10 = inlined_call_operand.vmem [shape: f32[1,32], index: 10, kind: input, shape index: {}]
  %s11 = inlined_call_operand.vmem [shape: f32[1,32], index: 11, kind: input, shape index: {}]
  %s12 = inlined_call_operand.vmem [shape: f32[1,32], index: 12, kind: input, shape index: {}]
  %s13 = inlined_call_operand.hbm [shape: f32[2,16,32], index: 13, kind: output, shape index: {}]
  %s14 = sld [smem:[#allocation0]]
  $region85: #{tpu_custom_call.1} parent=0
    _
  %s16 = ssub.s32 1, %s14
  %s17 = scalar_select 0, %s16, %s14
  $region1: #{tpu_custom_call.1} parent=0
    #allocation3 [shape = 'u8[16384]{0}', space=vmem, size = 0x4000, scoped, tag = 'output window, operand 0']
    #allocation4 [shape = 's32[2]{0}', space=sflag, size = 0x8, scoped, tag = 'scoped memory for tpu_custom_call.1']
    %18 = vsyncpa [#allocation4], 0
    %s19 = scalar_lea.sflag [#allocation4], 1
    %20 = vsyncpa %s19, 0
    loop: start=0, step=1, limit=4
    $region2: #{tpu_custom_call.1} parent=1 // loop_pre_header
      _
    $region3: #{tpu_custom_call.1} parent=1 // loop_header
      %s22 = sphi 0, %s26
      %p23 = scmp.ge.s32.totalorder %s22, 4
      %s32 = sphi 0, %s34
      %s35 = sphi 0, %s32
      %s36 = sphi 0, %s35
      %s52 = sphi 0, %s36
      %s56 = sphi 0, %s56
      %s58 = sphi 0, %s56
      %s59 = sphi 0, %s58
      %s73 = sphi 0, %s59
      %s77 = sphi 0, %s77
      %s79 = sphi 0, %s77
      %s80 = sphi 0, %s79
      %s94 = sphi 0, %s80
      %s98 = sphi 0, %s98
      %s100 = sphi 0, %s98
      %s101 = sphi 0, %s100
      %s115 = sphi 0, %s101
      %s119 = sphi 0, %s119
      %s121 = sphi 0, %s119
      %s122 = sphi 0, %s121
      %s136 = sphi 0, %s122
      %s140 = sphi 0, %s140
      %s142 = sphi 0, %s140
      %s143 = sphi 0, %s142
      %s157 = sphi 0, %s143
      %s161 = sphi 0, %s161
      %s163 = sphi 0, %s161
      %s164 = sphi 0, %s163
      %s178 = sphi 0, %s164
      %s182 = sphi 0, %s182
      %s184 = sphi 0, %s182
      %s185 = sphi 0, %s184
      %s199 = sphi 0, %s185
      %s203 = sphi 0, %s203
      %s205 = sphi 0, %s203
      %s206 = sphi 0, %s205
      %s220 = sphi 0, %s206
      %s224 = sphi 0, %s224
      %s226 = sphi 0, %s224
      %s227 = sphi 0, %s226
      %s241 = sphi 0, %s227
      %s245 = sphi 0, %s245
      %s247 = sphi 0, %s245
      %s248 = sphi 0, %s247
      %s262 = sphi 0, %s248
      %s266 = sphi 0, %s266
      %s268 = sphi 0, %s266
      %s269 = sphi 0, %s268
      %s283 = sphi 0, %s269
      %s287 = sphi 0, %s287
      %s289 = sphi 0, %s287
      %s290 = sphi 0, %s289
      %s304 = sphi 0, %s290
      %s310 = sphi 0, %s312
      %s313 = sphi 0, %s310
      %s314 = sphi 0, %s313
      %s330 = sphi 0, %s314
    $region4: #{tpu_custom_call.1} parent=1 // loop_header_branch
      %25 = sbr.rel (%p23) target = $region8
    $region5: #{tpu_custom_call.1} parent=1 // loop_body
      %s27 = ssub.s32 %s22, 1
      %s28 = ssub.s32 %s22, 2
      %s29 = sadd.s32 %s22, 1
      %s30 = ssub.s32 %s22, %s29
      %p31 = scmp.eq.s32.totalorder %s30, 0
      %s33 = sadd.s32 %s32, 1
      %s34 = scalar_select %p31, %s32, %s33
      %p37 = pneg %p31
      %p38 = scmp.eq.s32.totalorder %s22, 1
      %p39 = por %p37, %p38
      %p40 = scmp.ne.s32.totalorder %s32, %s35
      %p41 = scmp.eq.s32.totalorder %s22, 0
      %p42 = por %p40, %p41
      %p43 = scmp.ne.s32.totalorder %s32, %s35
      %p44 = scmp.eq.s32.totalorder %s27, 1
      %p45 = por %p43, %p44
      %p46 = scmp.ne.s32.totalorder %s35, %s36
      %p47 = scmp.eq.s32.totalorder %s27, 0
      %p48 = por %p46, %p47
      %p49 = scmp.ne.s32.totalorder %s35, %s36
      %p50 = scmp.eq.s32.totalorder %s28, 1
      %p51 = por %p49, %p50
      %p53 = scmp.ne.s32.totalorder %s36, %s52
      %p54 = scmp.eq.s32.totalorder %s28, 0
      %p55 = por %p53, %p54
      %s57 = sadd.s32 %s56, 1
      %p60 = scmp.eq.s32.totalorder %s22, 1
      %p61 = scmp.ne.s32.totalorder %s56, %s58
      %p62 = scmp.eq.s32.totalorder %s22, 0
      %p63 = por %p61, %p62
      %p64 = scmp.ne.s32.totalorder %s56, %s58
      %p65 = scmp.eq.s32.totalorder %s27, 1
      %p66 = por %p64, %p65
      %p67 = scmp.ne.s32.totalorder %s58, %s59
      %p68 = scmp.eq.s32.totalorder %s27, 0
      %p69 = por %p67, %p68
      %p70 = scmp.ne.s32.totalorder %s58, %s59
      %p71 = scmp.eq.s32.totalorder %s28, 1
      %p72 = por %p70, %p71
      %p74 = scmp.ne.s32.totalorder %s59, %s73
      %p75 = scmp.eq.s32.totalorder %s28, 0
      %p76 = por %p74, %p75
      %s78 = sadd.s32 %s77, 1
      %p81 = scmp.eq.s32.totalorder %s22, 1
      %p82 = scmp.ne.s32.totalorder %s77, %s79
      %p83 = scmp.eq.s32.totalorder %s22, 0
      %p84 = por %p82, %p83
      %p85 = scmp.ne.s32.totalorder %s77, %s79
      %p86 = scmp.eq.s32.totalorder %s27, 1
      %p87 = por %p85, %p86
      %p88 = scmp.ne.s32.totalorder %s79, %s80
      %p89 = scmp.eq.s32.totalorder %s27, 0
      %p90 = por %p88, %p89
      %p91 = scmp.ne.s32.totalorder %s79, %s80
      %p92 = scmp.eq.s32.totalorder %s28, 1
      %p93 = por %p91, %p92
      %p95 = scmp.ne.s32.totalorder %s80, %s94
      %p96 = scmp.eq.s32.totalorder %s28, 0
      %p97 = por %p95, %p96
      %s99 = sadd.s32 %s98, 1
      %p102 = scmp.eq.s32.totalorder %s22, 1
      %p103 = scmp.ne.s32.totalorder %s98, %s100
      %p104 = scmp.eq.s32.totalorder %s22, 0
      %p105 = por %p103, %p104
      %p106 = scmp.ne.s32.totalorder %s98, %s100
      %p107 = scmp.eq.s32.totalorder %s27, 1
      %p108 = por %p106, %p107
      %p109 = scmp.ne.s32.totalorder %s100, %s101
      %p110 = scmp.eq.s32.totalorder %s27, 0
      %p111 = por %p109, %p110
      %p112 = scmp.ne.s32.totalorder %s100, %s101
      %p113 = scmp.eq.s32.totalorder %s28, 1
      %p114 = por %p112, %p113
      %p116 = scmp.ne.s32.totalorder %s101, %s115
      %p117 = scmp.eq.s32.totalorder %s28, 0
      %p118 = por %p116, %p117
      %s120 = sadd.s32 %s119, 1
      %p123 = scmp.eq.s32.totalorder %s22, 1
      %p124 = scmp.ne.s32.totalorder %s119, %s121
      %p125 = scmp.eq.s32.totalorder %s22, 0
      %p126 = por %p124, %p125
      %p127 = scmp.ne.s32.totalorder %s119, %s121
      %p128 = scmp.eq.s32.totalorder %s27, 1
      %p129 = por %p127, %p128
      %p130 = scmp.ne.s32.totalorder %s121, %s122
      %p131 = scmp.eq.s32.totalorder %s27, 0
      %p132 = por %p130, %p131
      %p133 = scmp.ne.s32.totalorder %s121, %s122
      %p134 = scmp.eq.s32.totalorder %s28, 1
      %p135 = por %p133, %p134
      %p137 = scmp.ne.s32.totalorder %s122, %s136
      %p138 = scmp.eq.s32.totalorder %s28, 0
      %p139 = por %p137, %p138
      %s141 = sadd.s32 %s140, 1
      %p144 = scmp.eq.s32.totalorder %s22, 1
      %p145 = scmp.ne.s32.totalorder %s140, %s142
      %p146 = scmp.eq.s32.totalorder %s22, 0
      %p147 = por %p145, %p146
      %p148 = scmp.ne.s32.totalorder %s140, %s142
      %p149 = scmp.eq.s32.totalorder %s27, 1
      %p150 = por %p148, %p149
      %p151 = scmp.ne.s32.totalorder %s142, %s143
      %p152 = scmp.eq.s32.totalorder %s27, 0
      %p153 = por %p151, %p152
      %p154 = scmp.ne.s32.totalorder %s142, %s143
      %p155 = scmp.eq.s32.totalorder %s28, 1
      %p156 = por %p154, %p155
      %p158 = scmp.ne.s32.totalorder %s143, %s157
      %p159 = scmp.eq.s32.totalorder %s28, 0
      %p160 = por %p158, %p159
      %s162 = sadd.s32 %s161, 1
      %p165 = scmp.eq.s32.totalorder %s22, 1
      %p166 = scmp.ne.s32.totalorder %s161, %s163
      %p167 = scmp.eq.s32.totalorder %s22, 0
      %p168 = por %p166, %p167
      %p169 = scmp.ne.s32.totalorder %s161, %s163
      %p170 = scmp.eq.s32.totalorder %s27, 1
      %p171 = por %p169, %p170
      %p172 = scmp.ne.s32.totalorder %s163, %s164
      %p173 = scmp.eq.s32.totalorder %s27, 0
      %p174 = por %p172, %p173
      %p175 = scmp.ne.s32.totalorder %s163, %s164
      %p176 = scmp.eq.s32.totalorder %s28, 1
      %p177 = por %p175, %p176
      %p179 = scmp.ne.s32.totalorder %s164, %s178
      %p180 = scmp.eq.s32.totalorder %s28, 0
      %p181 = por %p179, %p180
      %s183 = sadd.s32 %s182, 1
      %p186 = scmp.eq.s32.totalorder %s22, 1
      %p187 = scmp.ne.s32.totalorder %s182, %s184
      %p188 = scmp.eq.s32.totalorder %s22, 0
      %p189 = por %p187, %p188
      %p190 = scmp.ne.s32.totalorder %s182, %s184
      %p191 = scmp.eq.s32.totalorder %s27, 1
      %p192 = por %p190, %p191
      %p193 = scmp.ne.s32.totalorder %s184, %s185
      %p194 = scmp.eq.s32.totalorder %s27, 0
      %p195 = por %p193, %p194
      %p196 = scmp.ne.s32.totalorder %s184, %s185
      %p197 = scmp.eq.s32.totalorder %s28, 1
      %p198 = por %p196, %p197
      %p200 = scmp.ne.s32.totalorder %s185, %s199
      %p201 = scmp.eq.s32.totalorder %s28, 0
      %p202 = por %p200, %p201
      %s204 = sadd.s32 %s203, 1
      %p207 = scmp.eq.s32.totalorder %s22, 1
      %p208 = scmp.ne.s32.totalorder %s203, %s205
      %p209 = scmp.eq.s32.totalorder %s22, 0
      %p210 = por %p208, %p209
      %p211 = scmp.ne.s32.totalorder %s203, %s205
      %p212 = scmp.eq.s32.totalorder %s27, 1
      %p213 = por %p211, %p212
      %p214 = scmp.ne.s32.totalorder %s205, %s206
      %p215 = scmp.eq.s32.totalorder %s27, 0
      %p216 = por %p214, %p215
      %p217 = scmp.ne.s32.totalorder %s205, %s206
      %p218 = scmp.eq.s32.totalorder %s28, 1
      %p219 = por %p217, %p218
      %p221 = scmp.ne.s32.totalorder %s206, %s220
      %p222 = scmp.eq.s32.totalorder %s28, 0
      %p223 = por %p221, %p222
      %s225 = sadd.s32 %s224, 1
      %p228 = scmp.eq.s32.totalorder %s22, 1
      %p229 = scmp.ne.s32.totalorder %s224, %s226
      %p230 = scmp.eq.s32.totalorder %s22, 0
      %p231 = por %p229, %p230
      %p232 = scmp.ne.s32.totalorder %s224, %s226
      %p233 = scmp.eq.s32.totalorder %s27, 1
      %p234 = por %p232, %p233
      %p235 = scmp.ne.s32.totalorder %s226, %s227
      %p236 = scmp.eq.s32.totalorder %s27, 0
      %p237 = por %p235, %p236
      %p238 = scmp.ne.s32.totalorder %s226, %s227
      %p239 = scmp.eq.s32.totalorder %s28, 1
      %p240 = por %p238, %p239
      %p242 = scmp.ne.s32.totalorder %s227, %s241
      %p243 = scmp.eq.s32.totalorder %s28, 0
      %p244 = por %p242, %p243
      %s246 = sadd.s32 %s245, 1
      %p249 = scmp.eq.s32.totalorder %s22, 1
      %p250 = scmp.ne.s32.totalorder %s245, %s247
      %p251 = scmp.eq.s32.totalorder %s22, 0
      %p252 = por %p250, %p251
      %p253 = scmp.ne.s32.totalorder %s245, %s247
      %p254 = scmp.eq.s32.totalorder %s27, 1
      %p255 = por %p253, %p254
      %p256 = scmp.ne.s32.totalorder %s247, %s248
      %p257 = scmp.eq.s32.totalorder %s27, 0
      %p258 = por %p256, %p257
      %p259 = scmp.ne.s32.totalorder %s247, %s248
      %p260 = scmp.eq.s32.totalorder %s28, 1
      %p261 = por %p259, %p260
      %p263 = scmp.ne.s32.totalorder %s248, %s262
      %p264 = scmp.eq.s32.totalorder %s28, 0
      %p265 = por %p263, %p264
      %s267 = sadd.s32 %s266, 1
      %p270 = scmp.eq.s32.totalorder %s22, 1
      %p271 = scmp.ne.s32.totalorder %s266, %s268
      %p272 = scmp.eq.s32.totalorder %s22, 0
      %p273 = por %p271, %p272
      %p274 = scmp.ne.s32.totalorder %s266, %s268
      %p275 = scmp.eq.s32.totalorder %s27, 1
      %p276 = por %p274, %p275
      %p277 = scmp.ne.s32.totalorder %s268, %s269
      %p278 = scmp.eq.s32.totalorder %s27, 0
      %p279 = por %p277, %p278
      %p280 = scmp.ne.s32.totalorder %s268, %s269
      %p281 = scmp.eq.s32.totalorder %s28, 1
      %p282 = por %p280, %p281
      %p284 = scmp.ne.s32.totalorder %s269, %s283
      %p285 = scmp.eq.s32.totalorder %s28, 0
      %p286 = por %p284, %p285
      %s288 = sadd.s32 %s287, 1
      %p291 = scmp.eq.s32.totalorder %s22, 1
      %p292 = scmp.ne.s32.totalorder %s287, %s289
      %p293 = scmp.eq.s32.totalorder %s22, 0
      %p294 = por %p292, %p293
      %p295 = scmp.ne.s32.totalorder %s287, %s289
      %p296 = scmp.eq.s32.totalorder %s27, 1
      %p297 = por %p295, %p296
      %p298 = scmp.ne.s32.totalorder %s289, %s290
      %p299 = scmp.eq.s32.totalorder %s27, 0
      %p300 = por %p298, %p299
      %p301 = scmp.ne.s32.totalorder %s289, %s290
      %p302 = scmp.eq.s32.totalorder %s28, 1
      %p303 = por %p301, %p302
      %p305 = scmp.ne.s32.totalorder %s290, %s304
      %p306 = scmp.eq.s32.totalorder %s28, 0
      %p307 = por %p305, %p306
      %s308 = ssub.s32 %s22, %s29
      %p309 = scmp.eq.s32.totalorder %s308, 0
      %s311 = sadd.s32 %s310, 1
      %s312 = scalar_select %p309, %s310, %s311
      %p315 = pneg %p309
      %p316 = scmp.eq.s32.totalorder %s22, 1
      %p317 = por %p315, %p316
      %p318 = scmp.ne.s32.totalorder %s310, %s313
      %p319 = scmp.eq.s32.totalorder %s22, 0
      %p320 = por %p318, %p319
      %p321 = scmp.ne.s32.totalorder %s310, %s313
      %p322 = scmp.eq.s32.totalorder %s27, 1
      %p323 = por %p321, %p322
      %p324 = scmp.ne.s32.totalorder %s313, %s314
      %p325 = scmp.eq.s32.totalorder %s27, 0
      %p326 = por %p324, %p325
      %p327 = scmp.ne.s32.totalorder %s313, %s314
      %p328 = scmp.eq.s32.totalorder %s28, 1
      %p329 = por %p327, %p328
      %p331 = scmp.ne.s32.totalorder %s314, %s330
      %p332 = scmp.eq.s32.totalorder %s28, 0
      %p333 = por %p331, %p332
      %p334 = scmp.le.s32.totalorder 1, %s22
      %p335 = scmp.lt.s32.totalorder %s22, 3
      %p336 = pnand %p334, %p335
      %p337 = pneg %p336
      // Predicated region
      $region9: #{tpu_custom_call.1} parent=5 // pred_check
        _
      $region10: #{tpu_custom_call.1} parent=5 // pred_check_branch
        %339 = sbr.rel (%p336) target = $region12
      $region11: #{tpu_custom_call.1} parent=5 // pred_region
        %s340 = ssub.s32 %s22, 1
        // Predicated region
        $region13: #{tpu_custom_call.1} parent=11 // pred_check
          %p341 = pneg %p69
        $region14: #{tpu_custom_call.1} parent=11 // pred_check_branch
          %343 = sbr.rel (%p341) target = $region16
        $region15: #{tpu_custom_call.1} parent=11 // pred_region
          _
        $region16: #{tpu_custom_call.1} parent=11 // pred_fallthru
          _
        // Predicated region
        $region17: #{tpu_custom_call.1} parent=11 // pred_check
          %p344 = pneg %p90
        $region18: #{tpu_custom_call.1} parent=11 // pred_check_branch
          %346 = sbr.rel (%p344) target = $region20
        $region19: #{tpu_custom_call.1} parent=11 // pred_region
          _
        $region20: #{tpu_custom_call.1} parent=11 // pred_fallthru
          _
        // Predicated region
        $region21: #{tpu_custom_call.1} parent=11 // pred_check
          %p347 = pneg %p111
        $region22: #{tpu_custom_call.1} parent=11 // pred_check_branch
          %349 = sbr.rel (%p347) target = $region24
        $region23: #{tpu_custom_call.1} parent=11 // pred_region
          _
        $region24: #{tpu_custom_call.1} parent=11 // pred_fallthru
          _
        // Predicated region
        $region25: #{tpu_custom_call.1} parent=11 // pred_check
          %p350 = pneg %p132
        $region26: #{tpu_custom_call.1} parent=11 // pred_check_branch
          %352 = sbr.rel (%p350) target = $region28
        $region27: #{tpu_custom_call.1} parent=11 // pred_region
          _
        $region28: #{tpu_custom_call.1} parent=11 // pred_fallthru
          _
        // Predicated region
        $region29: #{tpu_custom_call.1} parent=11 // pred_check
          %p353 = pneg %p153
        $region30: #{tpu_custom_call.1} parent=11 // pred_check_branch
          %355 = sbr.rel (%p353) target = $region32
        $region31: #{tpu_custom_call.1} parent=11 // pred_region
          _
        $region32: #{tpu_custom_call.1} parent=11 // pred_fallthru
          _
        // Predicated region
        $region33: #{tpu_custom_call.1} parent=11 // pred_check
          %p356 = pneg %p174
        $region34: #{tpu_custom_call.1} parent=11 // pred_check_branch
          %358 = sbr.rel (%p356) target = $region36
        $region35: #{tpu_custom_call.1} parent=11 // pred_region
          _
        $region36: #{tpu_custom_call.1} parent=11 // pred_fallthru
          _
        // Predicated region
        $region37: #{tpu_custom_call.1} parent=11 // pred_check
          %p359 = pneg %p195
        $region38: #{tpu_custom_call.1} parent=11 // pred_check_branch
          %361 = sbr.rel (%p359) target = $region40
        $region39: #{tpu_custom_call.1} parent=11 // pred_region
          _
        $region40: #{tpu_custom_call.1} parent=11 // pred_fallthru
          _
        // Predicated region
        $region41: #{tpu_custom_call.1} parent=11 // pred_check
          %p362 = pneg %p216
        $region42: #{tpu_custom_call.1} parent=11 // pred_check_branch
          %364 = sbr.rel (%p362) target = $region44
        $region43: #{tpu_custom_call.1} parent=11 // pred_region
          _
        $region44: #{tpu_custom_call.1} parent=11 // pred_fallthru
          _
        // Predicated region
        $region45: #{tpu_custom_call.1} parent=11 // pred_check
          %p365 = pneg %p237
        $region46: #{tpu_custom_call.1} parent=11 // pred_check_branch
          %367 = sbr.rel (%p365) target = $region48
        $region47: #{tpu_custom_call.1} parent=11 // pred_region
          _
        $region48: #{tpu_custom_call.1} parent=11 // pred_fallthru
          _
        // Predicated region
        $region49: #{tpu_custom_call.1} parent=11 // pred_check
          %p368 = pneg %p258
        $region50: #{tpu_custom_call.1} parent=11 // pred_check_branch
          %370 = sbr.rel (%p368) target = $region52
        $region51: #{tpu_custom_call.1} parent=11 // pred_region
          _
        $region52: #{tpu_custom_call.1} parent=11 // pred_fallthru
          _
        // Predicated region
        $region53: #{tpu_custom_call.1} parent=11 // pred_check
          %p371 = pneg %p279
        $region54: #{tpu_custom_call.1} parent=11 // pred_check_branch
          %373 = sbr.rel (%p371) target = $region56
        $region55: #{tpu_custom_call.1} parent=11 // pred_region
          _
        $region56: #{tpu_custom_call.1} parent=11 // pred_fallthru
          _
        // Predicated region
        $region57: #{tpu_custom_call.1} parent=11 // pred_check
          %p374 = pneg %p300
        $region58: #{tpu_custom_call.1} parent=11 // pred_check_branch
          %376 = sbr.rel (%p374) target = $region60
        $region59: #{tpu_custom_call.1} parent=11 // pred_region
          _
        $region60: #{tpu_custom_call.1} parent=11 // pred_fallthru
          _
      $region12: #{tpu_custom_call.1} parent=5 // pred_fallthru
        _
      %p377 = scmp.lt.s32.totalorder %s22, 2
      // Predicated region
      $region61: #{tpu_custom_call.1} parent=5 // pred_check
        %p378 = pneg %p377
      $region62: #{tpu_custom_call.1} parent=5 // pred_check_branch
        %380 = sbr.rel (%p378) target = $region64
      $region63: #{tpu_custom_call.1} parent=5 // pred_region
        // Predicated region
        $region65: #{tpu_custom_call.1} parent=63 // pred_check
          %p381 = pneg %p42
        $region66: #{tpu_custom_call.1} parent=63 // pred_check_branch
          %383 = sbr.rel (%p381) target = $region68
        $region67: #{tpu_custom_call.1} parent=63 // pred_region
          %p384 = scmp.lt.s32.totalorder %s22, 1
          %s385 = scalar_select %p384, %s22, 1
          %s386 = smul.addr %s385, 2
          %s387 = smul.addr %s386, 4
          %s388 = scalar_lea.vmem %s0, %s387
        $region68: #{tpu_custom_call.1} parent=63 // pred_fallthru
          _
      $region64: #{tpu_custom_call.1} parent=5 // pred_fallthru
        _
      %p389 = scmp.le.s32.totalorder 1, %s22
      %p390 = scmp.lt.s32.totalorder %s22, 3
      %p391 = pnand %p389, %p390
      %p392 = pneg %p391
      // Predicated region
      $region69: #{tpu_custom_call.1} parent=5 // pred_check
        _
      $region70: #{tpu_custom_call.1} parent=5 // pred_check_branch
        %394 = sbr.rel (%p391) target = $region72
      $region71: #{tpu_custom_call.1} parent=5 // pred_region
        %s395 = ssub.s32 %s22, 1
        %p396 = scmp.lt.s32.totalorder %s27, 1
        %s397 = scalar_select %p396, %s27, 1
        %s398 = smul.addr %s397, 2
        %s399 = smul.addr %s398, 4
        %s400 = scalar_lea.vmem %s0, %s399
        %p401 = pneg %p48
        %p402 = pneg %p45
        %p403 = pneg %p69
        %p404 = pneg %p66
        %p405 = pneg %p90
        %p406 = pneg %p87
        %p407 = pneg %p111
        %p408 = pneg %p108
        %p409 = pneg %p132
        %p410 = pneg %p129
        %p411 = pneg %p153
        %p412 = pneg %p150
        %p413 = pneg %p174
        %p414 = pneg %p171
        %p415 = pneg %p195
        %p416 = pneg %p192
        %p417 = pneg %p216
        %p418 = pneg %p213
        %p419 = pneg %p237
        %p420 = pneg %p234
        %p421 = pneg %p258
        %p422 = pneg %p255
        %p423 = pneg %p279
        %p424 = pneg %p276
        %p425 = pneg %p300
        %p426 = pneg %p297
        %p427 = pneg %p326
        %p428 = pneg %p323
        %s429 = sand.u32 %s313, 1
        %s430 = scalar_lea.sflag [#allocation4], %s429
        %s431 = sand.u32 %s313, 1
        %s432 = smul.addr %s431, 16
        %s433 = scalar_lea.vmem [#allocation3], %s432
        %p434 = scmp.lt.s32.totalorder %s27, 1
        %s435 = scalar_select %p434, %s27, 1
        %s436 = smul.addr %s435, 2
        %s437 = smul.addr %s436, 4
        %s438 = scalar_lea.vmem %s0, %s437
        %v440 = vld [vmem:[%s438] sm:$0xf]
        %v441 = vld [vmem:[%s438 + $0x4] sm:$0xf]
        %v442 = vunpack.c.l.bf16 %v440
        %v443 = vunpack.c.l.bf16 %v441
        %v444 = vld [vmem:[%s1] sm:$0xf]
        %v445 = vld [vmem:[%s1 + $0x4] sm:$0xf]
        %v446 = vld [vmem:[%s1 + $0x8] sm:$0xf]
        %v447 = vld [vmem:[%s1 + $0xc] sm:$0xf]
        %v448 = vld [vmem:[%s2] sm:$0x1]
        %v450 = vlaneseq
        %v451 = vshrl.u32 %v450, 7
        %v452 = vsub.s32 0, %v451
        %v453 = vrot.slane %v448, %v452
        %v457 = vunpack.c.l.b16 %v440
        %v458 = vunpack.c.l.b16 %v441
        %v459 = vpack.c.b16 %v458, %v457
        %v464 = vunpack.c.l.b16 %v444
        %v465 = vunpack.c.l.b16 %v445
        %v466 = vunpack.c.l.b16 %v446
        %v467 = vunpack.c.l.b16 %v447
        %v468 = vpack.c.b16 %v465, %v464
        %v469 = vpack.c.b16 %v467, %v466
        %vm472 = vcmask 261120
        %v474 = vsel %vm472, %v459, 0
        %476 = vmatprep.subr.bf16.mxu0 0
        %477 = vmatpush1.bf16.msra.mxu0 %v468
        %478 = vmatprep.subr.bf16.mxu0 0
        %479 = vmatpush1.bf16.msra.mxu0 %v469
        %480 = vmatprep.subr.bf16.mxu0 0
        %481 = vmatpush1.bf16.msra.mxu0 0
        %482 = vmatprep.subr.bf16.mxu0 0
        %483 = vmatpush1.bf16.msra.mxu0 0
        %484 = vmatprep.subr.bf16.mxu0 0
        %485 = vmatpush1.bf16.msra.mxu0 0
        %486 = vmatprep.subr.bf16.mxu0 0
        %487 = vmatpush1.bf16.msra.mxu0 0
        %488 = vmatprep.subr.bf16.mxu0 0
        %489 = vmatpush1.bf16.msra.mxu0 0
        %490 = vmatprep.subr.bf16.mxu0 0
        %491 = vmatpush1.bf16.msra.mxu0 0
        %492 = vmatprep.subr.bf16.mxu0 0
        %493 = vmatpush1.bf16.msra.mxu0 0
        %494 = vmatprep.subr.bf16.mxu0 0
        %495 = vmatpush1.bf16.msra.mxu0 0
        %496 = vmatprep.subr.bf16.mxu0 0
        %497 = vmatpush1.bf16.msra.mxu0 0
        %498 = vmatprep.subr.bf16.mxu0 0
        %499 = vmatpush1.bf16.msra.mxu0 0
        %500 = vmatprep.subr.bf16.mxu0 0
        %501 = vmatpush1.bf16.msra.mxu0 0
        %502 = vmatprep.subr.bf16.mxu0 0
        %503 = vmatpush1.bf16.msra.mxu0 0
        %504 = vmatprep.subr.bf16.mxu0 0
        %505 = vmatpush1.bf16.msra.mxu0 0
        %506 = vmatprep.subr.bf16.mxu0 0
        %507 = vmatpush1.bf16.msra.mxu0 0
        %508 = vmatprep.mubr.bf16.mxu0 0
        %509 = vmatmul.mubr.bf16.gmra.mrb[0].mxu0 %v474
        %v510 = vpop.f32.mrb[0].mxu0
        %v511 = vadd.f32 %v453, %v510
        %v512 = vpop.f32.mrb[0].mxu0
        %v513 = vpop.f32.mrb[0].mxu0
        %v514 = vadd.f32 %v453, %v513
        %v515 = vpop.f32.mrb[0].mxu0
        %516 = vdwg.mxu0
        %v517 = vpack.c.bf16 %v514, %v511
        %v518 = vlaneseq
        %v519 = vand.u32 %v518, 127
        %vm520 = vcmp.lt.s32.totalorder %v519, 8
        %v521 = vsel %vm520, 0.0, -1e+30
        %523 = vrot.lane.b32.xlu0 %v517, 96
        %v524 = vpop.permute.xlu0 %523
        %vm525 = vcmask 64512
        %v527 = vsel %vm525, %v517, 0
        %v530 = vsel %vm525, %v524, 0
        %532 = vmatprep.subr.bf16.mxu0 0
        %533 = vmatpush1.bf16.xpose.msra.mxu0 %v530
        %534 = vmatprep.subr.bf16.mxu0 0
        %535 = vmatpush1.bf16.xpose.msra.mxu0 0
        %536 = vmatprep.subr.bf16.mxu0 0
        %537 = vmatpush1.bf16.xpose.msra.mxu0 0
        %538 = vmatprep.subr.bf16.mxu0 0
        %539 = vmatpush1.bf16.xpose.msra.mxu0 0
        %540 = vmatprep.subr.bf16.mxu0 0
        %541 = vmatpush1.bf16.xpose.msra.mxu0 0
        %542 = vmatprep.subr.bf16.mxu0 0
        %543 = vmatpush1.bf16.xpose.msra.mxu0 0
        %544 = vmatprep.subr.bf16.mxu0 0
        %545 = vmatpush1.bf16.xpose.msra.mxu0 0
        %546 = vmatprep.subr.bf16.mxu0 0
        %547 = vmatpush1.bf16.xpose.msra.mxu0 0
        %548 = vmatprep.subr.bf16.mxu0 0
        %549 = vmatpush1.bf16.xpose.msra.mxu0 0
        %550 = vmatprep.subr.bf16.mxu0 0
        %551 = vmatpush1.bf16.xpose.msra.mxu0 0
        %552 = vmatprep.subr.bf16.mxu0 0
        %553 = vmatpush1.bf16.xpose.msra.mxu0 0
        %554 = vmatprep.subr.bf16.mxu0 0
        %555 = vmatpush1.bf16.xpose.msra.mxu0 0
        %556 = vmatprep.subr.bf16.mxu0 0
        %557 = vmatpush1.bf16.xpose.msra.mxu0 0
        %558 = vmatprep.subr.bf16.mxu0 0
        %559 = vmatpush1.bf16.xpose.msra.mxu0 0
        %560 = vmatprep.subr.bf16.mxu0 0
        %561 = vmatpush1.bf16.xpose.msra.mxu0 0
        %562 = vmatprep.subr.bf16.mxu0 0
        %563 = vmatpush1.bf16.xpose.msra.mxu0 0
        %564 = vmatprep.mubr.bf16.mxu0 0
        %565 = vmatmul.mubr.bf16.gmra.mrb[0].mxu0 %v527
        %v566 = vpop.f32.mrb[0].mxu0
        %v567 = vadd.f32 %v521, %v566
        %v568 = vpop.f32.mrb[0].mxu0
        %v569 = vpop.f32.mrb[0].mxu0
        %v570 = vadd.f32 %v521, %v569
        %v571 = vpop.f32.mrb[0].mxu0
        %572 = vdwg.mxu0
        %vm573 = vcmask 130048
        %v574 = vsel %vm573, %v567, -inf
        %575 = vmax.xlane.f32.xlu0 %v574
        %v576 = vpop.xlane.xlu0 %575
        %v577 = vsel %vm573, %v570, -inf
        %578 = vmax.xlane.f32.xlu0 %v577
        %v579 = vpop.xlane.xlu0 %578
        %v580 = vsub.f32 %v567, %v576
        %v581 = vsub.f32 %v570, %v579
        %v582 = vmul.f32 %v580, 1.442695
        %v583 = vpow.pop %v582
        %v584 = vmul.f32 %v581, 1.442695
        %v585 = vpow.pop %v584
        %v586 = vsel %vm573, %v583, 0.0
        %587 = vadd.xlane.f32.xlu0 %v586
        %v588 = vpop.xlane.xlu0 %587
        %v589 = vsel %vm573, %v585, 0.0
        %590 = vadd.xlane.f32.xlu0 %v589
        %v591 = vpop.xlane.xlu0 %590
        %v592 = vrcp.pop %v588
        %v593 = vrcp.pop %v591
        %v594 = vmul.f32 %v583, %v592
        %v595 = vmul.f32 %v585, %v593
        %v596 = vpack.c.bf16 %v595, %v594
        %597 = vrot.lane.b32.xlu0 %v517, 64
        %v598 = vpop.permute.xlu0 %597
        %v601 = vsel %vm573, %v596, 0
        %603 = vmatprep.subr.bf16.mxu0 0
        %604 = vmatpush1.bf16.msra.mxu0 %v598
        %605 = vmatprep.subr.bf16.mxu0 0
        %606 = vmatpush1.bf16.msra.mxu0 0
        %607 = vmatprep.subr.bf16.mxu0 0
        %608 = vmatpush1.bf16.msra.mxu0 0
        %609 = vmatprep.subr.bf16.mxu0 0
        %610 = vmatpush1.bf16.msra.mxu0 0
        %611 = vmatprep.subr.bf16.mxu0 0
        %612 = vmatpush1.bf16.msra.mxu0 0
        %613 = vmatprep.subr.bf16.mxu0 0
        %614 = vmatpush1.bf16.msra.mxu0 0
        %615 = vmatprep.subr.bf16.mxu0 0
        %616 = vmatpush1.bf16.msra.mxu0 0
        %617 = vmatprep.subr.bf16.mxu0 0
        %618 = vmatpush1.bf16.msra.mxu0 0
        %619 = vmatprep.subr.bf16.mxu0 0
        %620 = vmatpush1.bf16.msra.mxu0 0
        %621 = vmatprep.subr.bf16.mxu0 0
        %622 = vmatpush1.bf16.msra.mxu0 0
        %623 = vmatprep.subr.bf16.mxu0 0
        %624 = vmatpush1.bf16.msra.mxu0 0
        %625 = vmatprep.subr.bf16.mxu0 0
        %626 = vmatpush1.bf16.msra.mxu0 0
        %627 = vmatprep.subr.bf16.mxu0 0
        %628 = vmatpush1.bf16.msra.mxu0 0
        %629 = vmatprep.subr.bf16.mxu0 0
        %630 = vmatpush1.bf16.msra.mxu0 0
        %631 = vmatprep.subr.bf16.mxu0 0
        %632 = vmatpush1.bf16.msra.mxu0 0
        %633 = vmatprep.subr.bf16.mxu0 0
        %634 = vmatpush1.bf16.msra.mxu0 0
        %635 = vmatprep.mubr.bf16.mxu0 0
        %636 = vmatmul.mubr.bf16.gmra.mrb[0].mxu0 %v601
        %v637 = vpop.f32.mrb[0].mxu0
        %v638 = vadd.f32 0.0, %v637
        %v639 = vpop.f32.mrb[0].mxu0
        %v640 = vpop.f32.mrb[0].mxu0
        %v641 = vadd.f32 0.0, %v640
        %v642 = vpop.f32.mrb[0].mxu0
        %643 = vdwg.mxu0
        %v644 = vpack.c.bf16 %v641, %v638
        %645 = vrot.lane.b32.xlu0 %v517, 120
        %v646 = vpop.permute.xlu0 %645
        %647 = vrot.lane.b32.xlu0 %v517, 88
        %v648 = vpop.permute.xlu0 %647
        %v650 = vsel %vm525, %v646, 0
        %v653 = vsel %vm525, %v648, 0
        %655 = vmatprep.subr.bf16.mxu0 0
        %656 = vmatpush1.bf16.xpose.msra.mxu0 %v653
        %657 = vmatprep.subr.bf16.mxu0 0
        %658 = vmatpush1.bf16.xpose.msra.mxu0 0
        %659 = vmatprep.subr.bf16.mxu0 0
        %660 = vmatpush1.bf16.xpose.msra.mxu0 0
        %661 = vmatprep.subr.bf16.mxu0 0
        %662 = vmatpush1.bf16.xpose.msra.mxu0 0
        %663 = vmatprep.subr.bf16.mxu0 0
        %664 = vmatpush1.bf16.xpose.msra.mxu0 0
        %665 = vmatprep.subr.bf16.mxu0 0
        %666 = vmatpush1.bf16.xpose.msra.mxu0 0
        %667 = vmatprep.subr.bf16.mxu0 0
        %668 = vmatpush1.bf16.xpose.msra.mxu0 0
        %669 = vmatprep.subr.bf16.mxu0 0
        %670 = vmatpush1.bf16.xpose.msra.mxu0 0
        %671 = vmatprep.subr.bf16.mxu0 0
        %672 = vmatpush1.bf16.xpose.msra.mxu0 0
        %673 = vmatprep.subr.bf16.mxu0 0
        %674 = vmatpush1.bf16.xpose.msra.mxu0 0
        %675 = vmatprep.subr.bf16.mxu0 0
        %676 = vmatpush1.bf16.xpose.msra.mxu0 0
        %677 = vmatprep.subr.bf16.mxu0 0
        %678 = vmatpush1.bf16.xpose.msra.mxu0 0
        %679 = vmatprep.subr.bf16.mxu0 0
        %680 = vmatpush1.bf16.xpose.msra.mxu0 0
        %681 = vmatprep.subr.bf16.mxu0 0
        %682 = vmatpush1.bf16.xpose.msra.mxu0 0
        %683 = vmatprep.subr.bf16.mxu0 0
        %684 = vmatpush1.bf16.xpose.msra.mxu0 0
        %685 = vmatprep.subr.bf16.mxu0 0
        %686 = vmatpush1.bf16.xpose.msra.mxu0 0
        %687 = vmatprep.mubr.bf16.mxu0 0
        %688 = vmatmul.mubr.bf16.gmra.mrb[0].mxu0 %v650
        %v689 = vpop.f32.mrb[0].mxu0
        %v690 = vadd.f32 %v521, %v689
        %v691 = vpop.f32.mrb[0].mxu0
        %v692 = vpop.f32.mrb[0].mxu0
        %v693 = vadd.f32 %v521, %v692
        %v694 = vpop.f32.mrb[0].mxu0
        %695 = vdwg.mxu0
        %v696 = vsel %vm573, %v690, -inf
        %697 = vmax.xlane.f32.xlu0 %v696
        %v698 = vpop.xlane.xlu0 %697
        %v699 = vsel %vm573, %v693, -inf
        %700 = vmax.xlane.f32.xlu0 %v699
        %v701 = vpop.xlane.xlu0 %700
        %v702 = vsub.f32 %v690, %v698
        %v703 = vsub.f32 %v693, %v701
        %v704 = vmul.f32 %v702, 1.442695
        %v705 = vpow.pop %v704
        %v706 = vmul.f32 %v703, 1.442695
        %v707 = vpow.pop %v706
        %v708 = vsel %vm573, %v705, 0.0
        %709 = vadd.xlane.f32.xlu0 %v708
        %v710 = vpop.xlane.xlu0 %709
        %v711 = vsel %vm573, %v707, 0.0
        %712 = vadd.xlane.f32.xlu0 %v711
        %v713 = vpop.xlane.xlu0 %712
        %v714 = vrcp.pop %v710
        %v715 = vrcp.pop %v713
        %v716 = vmul.f32 %v705, %v714
        %v717 = vmul.f32 %v707, %v715
        %v718 = vpack.c.bf16 %v717, %v716
        %719 = vrot.lane.b32.xlu0 %v517, 56
        %v720 = vpop.permute.xlu0 %719
        %v723 = vsel %vm573, %v718, 0
        %725 = vmatprep.subr.bf16.mxu0 0
        %726 = vmatpush1.bf16.msra.mxu0 %v720
        %727 = vmatprep.subr.bf16.mxu0 0
        %728 = vmatpush1.bf16.msra.mxu0 0
        %729 = vmatprep.subr.bf16.mxu0 0
        %730 = vmatpush1.bf16.msra.mxu0 0
        %731 = vmatprep.subr.bf16.mxu0 0
        %732 = vmatpush1.bf16.msra.mxu0 0
        %733 = vmatprep.subr.bf16.mxu0 0
        %734 = vmatpush1.bf16.msra.mxu0 0
        %735 = vmatprep.subr.bf16.mxu0 0
        %736 = vmatpush1.bf16.msra.mxu0 0
        %737 = vmatprep.subr.bf16.mxu0 0
        %738 = vmatpush1.bf16.msra.mxu0 0
        %739 = vmatprep.subr.bf16.mxu0 0
        %740 = vmatpush1.bf16.msra.mxu0 0
        %741 = vmatprep.subr.bf16.mxu0 0
        %742 = vmatpush1.bf16.msra.mxu0 0
        %743 = vmatprep.subr.bf16.mxu0 0
        %744 = vmatpush1.bf16.msra.mxu0 0
        %745 = vmatprep.subr.bf16.mxu0 0
        %746 = vmatpush1.bf16.msra.mxu0 0
        %747 = vmatprep.subr.bf16.mxu0 0
        %748 = vmatpush1.bf16.msra.mxu0 0
        %749 = vmatprep.subr.bf16.mxu0 0
        %750 = vmatpush1.bf16.msra.mxu0 0
        %751 = vmatprep.subr.bf16.mxu0 0
        %752 = vmatpush1.bf16.msra.mxu0 0
        %753 = vmatprep.subr.bf16.mxu0 0
        %754 = vmatpush1.bf16.msra.mxu0 0
        %755 = vmatprep.subr.bf16.mxu0 0
        %756 = vmatpush1.bf16.msra.mxu0 0
        %757 = vmatprep.mubr.bf16.mxu0 0
        %758 = vmatmul.mubr.bf16.gmra.mrb[0].mxu0 %v723
        %v759 = vpop.f32.mrb[0].mxu0
        %v760 = vadd.f32 0.0, %v759
        %v761 = vpop.f32.mrb[0].mxu0
        %v762 = vpop.f32.mrb[0].mxu0
        %v763 = vadd.f32 0.0, %v762
        %v764 = vpop.f32.mrb[0].mxu0
        %765 = vdwg.mxu0
        %v766 = vpack.c.bf16 %v763, %v760
        %767 = vrot.lane.b32.xlu0 %v517, 112
        %v768 = vpop.permute.xlu0 %767
        %769 = vrot.lane.b32.xlu0 %v517, 80
        %v770 = vpop.permute.xlu0 %769
        %v772 = vsel %vm525, %v768, 0
        %v775 = vsel %vm525, %v770, 0
        %777 = vmatprep.subr.bf16.mxu0 0
        %778 = vmatpush1.bf16.xpose.msra.mxu0 %v775
        %779 = vmatprep.subr.bf16.mxu0 0
        %780 = vmatpush1.bf16.xpose.msra.mxu0 0
        %781 = vmatprep.subr.bf16.mxu0 0
        %782 = vmatpush1.bf16.xpose.msra.mxu0 0
        %783 = vmatprep.subr.bf16.mxu0 0
        %784 = vmatpush1.bf16.xpose.msra.mxu0 0
        %785 = vmatprep.subr.bf16.mxu0 0
        %786 = vmatpush1.bf16.xpose.msra.mxu0 0
        %787 = vmatprep.subr.bf16.mxu0 0
        %788 = vmatpush1.bf16.xpose.msra.mxu0 0
        %789 = vmatprep.subr.bf16.mxu0 0
        %790 = vmatpush1.bf16.xpose.msra.mxu0 0
        %791 = vmatprep.subr.bf16.mxu0 0
        %792 = vmatpush1.bf16.xpose.msra.mxu0 0
        %793 = vmatprep.subr.bf16.mxu0 0
        %794 = vmatpush1.bf16.xpose.msra.mxu0 0
        %795 = vmatprep.subr.bf16.mxu0 0
        %796 = vmatpush1.bf16.xpose.msra.mxu0 0
        %797 = vmatprep.subr.bf16.mxu0 0
        %798 = vmatpush1.bf16.xpose.msra.mxu0 0
        %799 = vmatprep.subr.bf16.mxu0 0
        %800 = vmatpush1.bf16.xpose.msra.mxu0 0
        %801 = vmatprep.subr.bf16.mxu0 0
        %802 = vmatpush1.bf16.xpose.msra.mxu0 0
        %803 = vmatprep.subr.bf16.mxu0 0
        %804 = vmatpush1.bf16.xpose.msra.mxu0 0
        %805 = vmatprep.subr.bf16.mxu0 0
        %806 = vmatpush1.bf16.xpose.msra.mxu0 0
        %807 = vmatprep.subr.bf16.mxu0 0
        %808 = vmatpush1.bf16.xpose.msra.mxu0 0
        %809 = vmatprep.mubr.bf16.mxu0 0
        %810 = vmatmul.mubr.bf16.gmra.mrb[0].mxu0 %v772
        %v811 = vpop.f32.mrb[0].mxu0
        %v812 = vadd.f32 %v521, %v811
        %v813 = vpop.f32.mrb[0].mxu0
        %v814 = vpop.f32.mrb[0].mxu0
        %v815 = vadd.f32 %v521, %v814
        %v816 = vpop.f32.mrb[0].mxu0
        %817 = vdwg.mxu0
        %v818 = vsel %vm573, %v812, -inf
        %819 = vmax.xlane.f32.xlu0 %v818
        %v820 = vpop.xlane.xlu0 %819
        %v821 = vsel %vm573, %v815, -inf
        %822 = vmax.xlane.f32.xlu0 %v821
        %v823 = vpop.xlane.xlu0 %822
        %v824 = vsub.f32 %v812, %v820
        %v825 = vsub.f32 %v815, %v823
        %v826 = vmul.f32 %v824, 1.442695
        %v827 = vpow.pop %v826
        %v828 = vmul.f32 %v825, 1.442695
        %v829 = vpow.pop %v828
        %v830 = vsel %vm573, %v827, 0.0
        %831 = vadd.xlane.f32.xlu0 %v830
        %v832 = vpop.xlane.xlu0 %831
        %v833 = vsel %vm573, %v829, 0.0
        %834 = vadd.xlane.f32.xlu0 %v833
        %v835 = vpop.xlane.xlu0 %834
        %v836 = vrcp.pop %v832
        %v837 = vrcp.pop %v835
        %v838 = vmul.f32 %v827, %v836
        %v839 = vmul.f32 %v829, %v837
        %v840 = vpack.c.bf16 %v839, %v838
        %841 = vrot.lane.b32.xlu0 %v517, 48
        %v842 = vpop.permute.xlu0 %841
        %v845 = vsel %vm573, %v840, 0
        %847 = vmatprep.subr.bf16.mxu0 0
        %848 = vmatpush1.bf16.msra.mxu0 %v842
        %849 = vmatprep.subr.bf16.mxu0 0
        %850 = vmatpush1.bf16.msra.mxu0 0
        %851 = vmatprep.subr.bf16.mxu0 0
        %852 = vmatpush1.bf16.msra.mxu0 0
        %853 = vmatprep.subr.bf16.mxu0 0
        %854 = vmatpush1.bf16.msra.mxu0 0
        %855 = vmatprep.subr.bf16.mxu0 0
        %856 = vmatpush1.bf16.msra.mxu0 0
        %857 = vmatprep.subr.bf16.mxu0 0
        %858 = vmatpush1.bf16.msra.mxu0 0
        %859 = vmatprep.subr.bf16.mxu0 0
        %860 = vmatpush1.bf16.msra.mxu0 0
        %861 = vmatprep.subr.bf16.mxu0 0
        %862 = vmatpush1.bf16.msra.mxu0 0
        %863 = vmatprep.subr.bf16.mxu0 0
        %864 = vmatpush1.bf16.msra.mxu0 0
        %865 = vmatprep.subr.bf16.mxu0 0
        %866 = vmatpush1.bf16.msra.mxu0 0
        %867 = vmatprep.subr.bf16.mxu0 0
        %868 = vmatpush1.bf16.msra.mxu0 0
        %869 = vmatprep.subr.bf16.mxu0 0
        %870 = vmatpush1.bf16.msra.mxu0 0
        %871 = vmatprep.subr.bf16.mxu0 0
        %872 = vmatpush1.bf16.msra.mxu0 0
        %873 = vmatprep.subr.bf16.mxu0 0
        %874 = vmatpush1.bf16.msra.mxu0 0
        %875 = vmatprep.subr.bf16.mxu0 0
        %876 = vmatpush1.bf16.msra.mxu0 0
        %877 = vmatprep.subr.bf16.mxu0 0
        %878 = vmatpush1.bf16.msra.mxu0 0
        %879 = vmatprep.mubr.bf16.mxu0 0
        %880 = vmatmul.mubr.bf16.gmra.mrb[0].mxu0 %v845
        %v881 = vpop.f32.mrb[0].mxu0
        %v882 = vadd.f32 0.0, %v881
        %v883 = vpop.f32.mrb[0].mxu0
        %v884 = vpop.f32.mrb[0].mxu0
        %v885 = vadd.f32 0.0, %v884
        %v886 = vpop.f32.mrb[0].mxu0
        %887 = vdwg.mxu0
        %v888 = vpack.c.bf16 %v885, %v882
        %889 = vrot.lane.b32.xlu0 %v517, 104
        %v890 = vpop.permute.xlu0 %889
        %891 = vrot.lane.b32.xlu0 %v517, 72
        %v892 = vpop.permute.xlu0 %891
        %v894 = vsel %vm525, %v890, 0
        %v897 = vsel %vm525, %v892, 0
        %899 = vmatprep.subr.bf16.mxu0 0
        %900 = vmatpush1.bf16.xpose.msra.mxu0 %v897
        %901 = vmatprep.subr.bf16.mxu0 0
        %902 = vmatpush1.bf16.xpose.msra.mxu0 0
        %903 = vmatprep.subr.bf16.mxu0 0
        %904 = vmatpush1.bf16.xpose.msra.mxu0 0
        %905 = vmatprep.subr.bf16.mxu0 0
        %906 = vmatpush1.bf16.xpose.msra.mxu0 0
        %907 = vmatprep.subr.bf16.mxu0 0
        %908 = vmatpush1.bf16.xpose.msra.mxu0 0
        %909 = vmatprep.subr.bf16.mxu0 0
        %910 = vmatpush1.bf16.xpose.msra.mxu0 0
        %911 = vmatprep.subr.bf16.mxu0 0
        %912 = vmatpush1.bf16.xpose.msra.mxu0 0
        %913 = vmatprep.subr.bf16.mxu0 0
        %914 = vmatpush1.bf16.xpose.msra.mxu0 0
        %915 = vmatprep.subr.bf16.mxu0 0
        %916 = vmatpush1.bf16.xpose.msra.mxu0 0
        %917 = vmatprep.subr.bf16.mxu0 0
        %918 = vmatpush1.bf16.xpose.msra.mxu0 0
        %919 = vmatprep.subr.bf16.mxu0 0
        %920 = vmatpush1.bf16.xpose.msra.mxu0 0
        %921 = vmatprep.subr.bf16.mxu0 0
        %922 = vmatpush1.bf16.xpose.msra.mxu0 0
        %923 = vmatprep.subr.bf16.mxu0 0
        %924 = vmatpush1.bf16.xpose.msra.mxu0 0
        %925 = vmatprep.subr.bf16.mxu0 0
        %926 = vmatpush1.bf16.xpose.msra.mxu0 0
        %927 = vmatprep.subr.bf16.mxu0 0
        %928 = vmatpush1.bf16.xpose.msra.mxu0 0
        %929 = vmatprep.subr.bf16.mxu0 0
        %930 = vmatpush1.bf16.xpose.msra.mxu0 0
        %931 = vmatprep.mubr.bf16.mxu0 0
        %932 = vmatmul.mubr.bf16.gmra.mrb[0].mxu0 %v894
        %v933 = vpop.f32.mrb[0].mxu0
        %v934 = vadd.f32 %v521, %v933
        %v935 = vpop.f32.mrb[0].mxu0
        %v936 = vpop.f32.mrb[0].mxu0
        %v937 = vadd.f32 %v521, %v936
        %v938 = vpop.f32.mrb[0].mxu0
        %939 = vdwg.mxu0
        %v940 = vsel %vm573, %v934, -inf
        %941 = vmax.xlane.f32.xlu0 %v940
        %v942 = vpop.xlane.xlu0 %941
        %v943 = vsel %vm573, %v937, -inf
        %944 = vmax.xlane.f32.xlu0 %v943
        %v945 = vpop.xlane.xlu0 %944
        %v946 = vsub.f32 %v934, %v942
        %v947 = vsub.f32 %v937, %v945
        %v948 = vmul.f32 %v946, 1.442695
        %v949 = vpow.pop %v948
        %v950 = vmul.f32 %v947, 1.442695
        %v951 = vpow.pop %v950
        %v952 = vsel %vm573, %v949, 0.0
        %953 = vadd.xlane.f32.xlu0 %v952
        %v954 = vpop.xlane.xlu0 %953
        %v955 = vsel %vm573, %v951, 0.0
        %956 = vadd.xlane.f32.xlu0 %v955
        %v957 = vpop.xlane.xlu0 %956
        %v958 = vrcp.pop %v954
        %v959 = vrcp.pop %v957
        %v960 = vmul.f32 %v949, %v958
        %v961 = vmul.f32 %v951, %v959
        %v962 = vpack.c.bf16 %v961, %v960
        %963 = vrot.lane.b32.xlu0 %v517, 40
        %v964 = vpop.permute.xlu0 %963
        %v967 = vsel %vm573, %v962, 0
        %969 = vmatprep.subr.bf16.mxu0 0
        %970 = vmatpush1.bf16.msra.mxu0 %v964
        %971 = vmatprep.subr.bf16.mxu0 0
        %972 = vmatpush1.bf16.msra.mxu0 0
        %973 = vmatprep.subr.bf16.mxu0 0
        %974 = vmatpush1.bf16.msra.mxu0 0
        %975 = vmatprep.subr.bf16.mxu0 0
        %976 = vmatpush1.bf16.msra.mxu0 0
        %977 = vmatprep.subr.bf16.mxu0 0
        %978 = vmatpush1.bf16.msra.mxu0 0
        %979 = vmatprep.subr.bf16.mxu0 0
        %980 = vmatpush1.bf16.msra.mxu0 0
        %981 = vmatprep.subr.bf16.mxu0 0
        %982 = vmatpush1.bf16.msra.mxu0 0
        %983 = vmatprep.subr.bf16.mxu0 0
        %984 = vmatpush1.bf16.msra.mxu0 0
        %985 = vmatprep.subr.bf16.mxu0 0
        %986 = vmatpush1.bf16.msra.mxu0 0
        %987 = vmatprep.subr.bf16.mxu0 0
        %988 = vmatpush1.bf16.msra.mxu0 0
        %989 = vmatprep.subr.bf16.mxu0 0
        %990 = vmatpush1.bf16.msra.mxu0 0
        %991 = vmatprep.subr.bf16.mxu0 0
        %992 = vmatpush1.bf16.msra.mxu0 0
        %993 = vmatprep.subr.bf16.mxu0 0
        %994 = vmatpush1.bf16.msra.mxu0 0
        %995 = vmatprep.subr.bf16.mxu0 0
        %996 = vmatpush1.bf16.msra.mxu0 0
        %997 = vmatprep.subr.bf16.mxu0 0
        %998 = vmatpush1.bf16.msra.mxu0 0
        %999 = vmatprep.subr.bf16.mxu0 0
        %1000 = vmatpush1.bf16.msra.mxu0 0
        %1001 = vmatprep.mubr.bf16.mxu0 0
        %1002 = vmatmul.mubr.bf16.gmra.mrb[0].mxu0 %v967
        %v1003 = vpop.f32.mrb[0].mxu0
        %v1004 = vadd.f32 0.0, %v1003
        %v1005 = vpop.f32.mrb[0].mxu0
        %v1006 = vpop.f32.mrb[0].mxu0
        %v1007 = vadd.f32 0.0, %v1006
        %v1008 = vpop.f32.mrb[0].mxu0
        %1009 = vdwg.mxu0
        %v1010 = vpack.c.bf16 %v1007, %v1004
        %1012 = vrot.lane.b32.xlu0 %v766, 8
        %v1013 = vpop.permute.xlu0 %1012
        %1015 = vrot.lane.b32.xlu0 %v888, 16
        %v1016 = vpop.permute.xlu0 %1015
        %1018 = vrot.lane.b32.xlu0 %v1010, 24
        %v1019 = vpop.permute.xlu0 %1018
        %v1022 = vsel %vm525, %v644, %v1013
        %v1024 = vsel %vm573, %v1022, %v1016
        %vm1025 = vcmask 195584
        %v1027 = vsel %vm1025, %v1024, %v1019
        %1029 = vst.msk [vmem:[#allocation2] sm:$0xff] %vm472, %v1027
        %v1030 = vld [vmem:[#allocation2] sm:$0xff]
        %v1031 = vld [vmem:[%s3] sm:$0xf]
        %v1032 = vld [vmem:[%s3 + $0x4] sm:$0xf]
        %v1033 = vld [vmem:[%s3 + $0x8] sm:$0xf]
        %v1034 = vld [vmem:[%s3 + $0xc] sm:$0xf]
        %v1035 = vld [vmem:[%s4] sm:$0x1]
        %v1037 = vlaneseq
        %v1038 = vshrl.u32 %v1037, 7
        %v1039 = vsub.s32 0, %v1038
        %v1040 = vrot.slane %v1035, %v1039
        %v1046 = vunpack.c.l.b16 %v1031
        %v1047 = vunpack.c.l.b16 %v1032
        %v1048 = vunpack.c.l.b16 %v1033
        %v1049 = vunpack.c.l.b16 %v1034
        %v1050 = vpack.c.b16 %v1047, %v1046
        %v1051 = vpack.c.b16 %v1049, %v1048
        %v1055 = vsel %vm472, %v1030, 0
        %1057 = vmatprep.subr.bf16.mxu0 0
        %1058 = vmatpush1.bf16.msra.mxu0 %v1050
        %1059 = vmatprep.subr.bf16.mxu0 0
        %1060 = vmatpush1.bf16.msra.mxu0 %v1051
        %1061 = vmatprep.subr.bf16.mxu0 0
        %1062 = vmatpush1.bf16.msra.mxu0 0
        %1063 = vmatprep.subr.bf16.mxu0 0
        %1064 = vmatpush1.bf16.msra.mxu0 0
        %1065 = vmatprep.subr.bf16.mxu0 0
        %1066 = vmatpush1.bf16.msra.mxu0 0
        %1067 = vmatprep.subr.bf16.mxu0 0
        %1068 = vmatpush1.bf16.msra.mxu0 0
        %1069 = vmatprep.subr.bf16.mxu0 0
        %1070 = vmatpush1.bf16.msra.mxu0 0
        %1071 = vmatprep.subr.bf16.mxu0 0
        %1072 = vmatpush1.bf16.msra.mxu0 0
        %1073 = vmatprep.subr.bf16.mxu0 0
        %1074 = vmatpush1.bf16.msra.mxu0 0
        %1075 = vmatprep.subr.bf16.mxu0 0
        %1076 = vmatpush1.bf16.msra.mxu0 0
        %1077 = vmatprep.subr.bf16.mxu0 0
        %1078 = vmatpush1.bf16.msra.mxu0 0
        %1079 = vmatprep.subr.bf16.mxu0 0
        %1080 = vmatpush1.bf16.msra.mxu0 0
        %1081 = vmatprep.subr.bf16.mxu0 0
        %1082 = vmatpush1.bf16.msra.mxu0 0
        %1083 = vmatprep.subr.bf16.mxu0 0
        %1084 = vmatpush1.bf16.msra.mxu0 0
        %1085 = vmatprep.subr.bf16.mxu0 0
        %1086 = vmatpush1.bf16.msra.mxu0 0
        %1087 = vmatprep.subr.bf16.mxu0 0
        %1088 = vmatpush1.bf16.msra.mxu0 0
        %1089 = vmatprep.mubr.bf16.mxu0 0
        %1090 = vmatmul.mubr.bf16.gmra.mrb[0].mxu0 %v1055
        %v1091 = vpop.f32.mrb[0].mxu0
        %v1092 = vadd.f32 %v1040, %v1091
        %v1093 = vpop.f32.mrb[0].mxu0
        %v1094 = vpop.f32.mrb[0].mxu0
        %v1095 = vadd.f32 %v1040, %v1094
        %v1096 = vpop.f32.mrb[0].mxu0
        %1097 = vdwg.mxu0
        %v1098 = vadd.f32 %v442, %v1092
        %v1099 = vadd.f32 %v443, %v1095
        %v1100 = vld [vmem:[%s5] sm:$0x1]
        %v1101 = vld [vmem:[%s6] sm:$0x1]
        %v1102 = vsel %vm472, %v1098, 0.0
        %1103 = vadd.xlane.f32.xlu0 %v1102
        %v1104 = vpop.xlane.xlu0 %1103
        %v1105 = vsel %vm472, %v1099, 0.0
        %1106 = vadd.xlane.f32.xlu0 %v1105
        %v1107 = vpop.xlane.xlu0 %1106
        %v1108 = vrcp.pop 32.0
        %v1109 = vmul.f32 %v1104, %v1108
        %v1110 = vmul.f32 %v1107, %v1108
        %v1111 = vsub.f32 %v1098, %v1109
        %v1112 = vsub.f32 %v1099, %v1110
        %v1113 = vmul.f32 %v1111, %v1111
        %v1114 = vmul.f32 %v1112, %v1112
        %v1115 = vsel %vm472, %v1113, 0.0
        %1116 = vadd.xlane.f32.xlu0 %v1115
        %v1117 = vpop.xlane.xlu0 %1116
        %v1118 = vsel %vm472, %v1114, 0.0
        %1119 = vadd.xlane.f32.xlu0 %v1118
        %v1120 = vpop.xlane.xlu0 %1119
        %v1121 = vmul.f32 %v1117, %v1108
        %v1122 = vmul.f32 %v1120, %v1108
        %v1123 = vadd.f32 %v1121, 1e-05
        %v1124 = vadd.f32 %v1122, 1e-05
        %v1125 = vrsqrt.pop %v1123
        %v1126 = vrsqrt.pop %v1124
        %v1127 = vmul.f32 %v1111, %v1125
        %v1128 = vmul.f32 %v1112, %v1126
        %v1130 = vlaneseq
        %v1131 = vshrl.u32 %v1130, 7
        %v1132 = vsub.s32 0, %v1131
        %v1133 = vrot.slane %v1100, %v1132
        %v1135 = vmul.f32 %v1127, %v1133
        %v1136 = vmul.f32 %v1128, %v1133
        %v1138 = vlaneseq
        %v1139 = vshrl.u32 %v1138, 7
        %v1140 = vsub.s32 0, %v1139
        %v1141 = vrot.slane %v1101, %v1140
        %v1143 = vadd.f32 %v1135, %v1141
        %v1144 = vadd.f32 %v1136, %v1141
        %v1145 = vpack.c.bf16 %v1144, %v1143
        %v1146 = vld [vmem:[%s7] sm:$0xf]
        %v1147 = vld [vmem:[%s7 + $0x4] sm:$0xf]
        %v1148 = vld [vmem:[%s7 + $0x8] sm:$0xf]
        %v1149 = vld [vmem:[%s7 + $0xc] sm:$0xf]
        %v1150 = vld [vmem:[%s8] sm:$0x1]
        %v1152 = vlaneseq
        %v1153 = vshrl.u32 %v1152, 7
        %v1154 = vsub.s32 0, %v1153
        %v1155 = vrot.slane %v1150, %v1154
        %v1161 = vunpack.c.l.b16 %v1146
        %v1162 = vunpack.c.l.b16 %v1147
        %v1163 = vunpack.c.l.b16 %v1148
        %v1164 = vunpack.c.l.b16 %v1149
        %v1165 = vpack.c.b16 %v1162, %v1161
        %v1166 = vpack.c.b16 %v1164, %v1163
        %v1170 = vsel %vm472, %v1145, 0
        %1172 = vmatprep.subr.bf16.mxu0 0
        %1173 = vmatpush1.bf16.msra.mxu0 %v1165
        %1174 = vmatprep.subr.bf16.mxu0 0
        %1175 = vmatpush1.bf16.msra.mxu0 %v1166
        %1176 = vmatprep.subr.bf16.mxu0 0
        %1177 = vmatpush1.bf16.msra.mxu0 0
        %1178 = vmatprep.subr.bf16.mxu0 0
        %1179 = vmatpush1.bf16.msra.mxu0 0
        %1180 = vmatprep.subr.bf16.mxu0 0
        %1181 = vmatpush1.bf16.msra.mxu0 0
        %1182 = vmatprep.subr.bf16.mxu0 0
        %1183 = vmatpush1.bf16.msra.mxu0 0
        %1184 = vmatprep.subr.bf16.mxu0 0
        %1185 = vmatpush1.bf16.msra.mxu0 0
        %1186 = vmatprep.subr.bf16.mxu0 0
        %1187 = vmatpush1.bf16.msra.mxu0 0
        %1188 = vmatprep.subr.bf16.mxu0 0
        %1189 = vmatpush1.bf16.msra.mxu0 0
        %1190 = vmatprep.subr.bf16.mxu0 0
        %1191 = vmatpush1.bf16.msra.mxu0 0
        %1192 = vmatprep.subr.bf16.mxu0 0
        %1193 = vmatpush1.bf16.msra.mxu0 0
        %1194 = vmatprep.subr.bf16.mxu0 0
        %1195 = vmatpush1.bf16.msra.mxu0 0
        %1196 = vmatprep.subr.bf16.mxu0 0
        %1197 = vmatpush1.bf16.msra.mxu0 0
        %1198 = vmatprep.subr.bf16.mxu0 0
        %1199 = vmatpush1.bf16.msra.mxu0 0
        %1200 = vmatprep.subr.bf16.mxu0 0
        %1201 = vmatpush1.bf16.msra.mxu0 0
        %1202 = vmatprep.subr.bf16.mxu0 0
        %1203 = vmatpush1.bf16.msra.mxu0 0
        %1204 = vmatprep.mubr.bf16.mxu0 0
        %1205 = vmatmul.mubr.bf16.gmra.mrb[0].mxu0 %v1170
        %v1206 = vpop.f32.mrb[0].mxu0
        %v1207 = vadd.f32 %v1155, %v1206
        %v1208 = vpop.f32.mrb[0].mxu0
        %v1209 = vpop.f32.mrb[0].mxu0
        %v1210 = vadd.f32 %v1155, %v1209
        %v1211 = vpop.f32.mrb[0].mxu0
        %1212 = vdwg.mxu0
        %v1213 = vmul.f32 %v1207, 0.5
        %v1214 = vmul.f32 %v1210, 0.5
        %v1215 = vmul.f32 %v1207, 0.70710677
        %v1216 = vmul.f32 %v1210, 0.70710677
        %v1217 = verf.f32.pop %v1215
        %v1218 = verf.f32.pop %v1216
        %v1219 = vadd.f32 %v1217, 1.0
        %v1220 = vadd.f32 %v1218, 1.0
        %v1221 = vmul.f32 %v1213, %v1219
        %v1222 = vmul.f32 %v1214, %v1220
        %v1223 = vpack.c.bf16 %v1222, %v1221
        %v1224 = vld [vmem:[%s9] sm:$0xf]
        %v1225 = vld [vmem:[%s9 + $0x4] sm:$0xf]
        %v1226 = vld [vmem:[%s9 + $0x8] sm:$0xf]
        %v1227 = vld [vmem:[%s9 + $0xc] sm:$0xf]
        %v1228 = vld [vmem:[%s9 + $0x10] sm:$0xf]
        %v1229 = vld [vmem:[%s9 + $0x14] sm:$0xf]
        %v1230 = vld [vmem:[%s9 + $0x18] sm:$0xf]
        %v1231 = vld [vmem:[%s9 + $0x1c] sm:$0xf]
        %v1232 = vld [vmem:[%s9 + $0x20] sm:$0xf]
        %v1233 = vld [vmem:[%s9 + $0x24] sm:$0xf]
        %v1234 = vld [vmem:[%s9 + $0x28] sm:$0xf]
        %v1235 = vld [vmem:[%s9 + $0x2c] sm:$0xf]
        %v1236 = vld [vmem:[%s9 + $0x30] sm:$0xf]
        %v1237 = vld [vmem:[%s9 + $0x34] sm:$0xf]
        %v1238 = vld [vmem:[%s9 + $0x38] sm:$0xf]
        %v1239 = vld [vmem:[%s9 + $0x3c] sm:$0xf]
        %v1240 = vld [vmem:[%s10] sm:$0x1]
        %v1242 = vlaneseq
        %v1243 = vshrl.u32 %v1242, 7
        %v1244 = vsub.s32 0, %v1243
        %v1245 = vrot.slane %v1240, %v1244
        %v1263 = vunpack.c.l.b16 %v1224
        %v1264 = vunpack.c.l.b16 %v1225
        %v1265 = vunpack.c.l.b16 %v1226
        %v1266 = vunpack.c.l.b16 %v1227
        %v1267 = vunpack.c.l.b16 %v1228
        %v1268 = vunpack.c.l.b16 %v1229
        %v1269 = vunpack.c.l.b16 %v1230
        %v1270 = vunpack.c.l.b16 %v1231
        %v1271 = vunpack.c.l.b16 %v1232
        %v1272 = vunpack.c.l.b16 %v1233
        %v1273 = vunpack.c.l.b16 %v1234
        %v1274 = vunpack.c.l.b16 %v1235
        %v1275 = vunpack.c.l.b16 %v1236
        %v1276 = vunpack.c.l.b16 %v1237
        %v1277 = vunpack.c.l.b16 %v1238
        %v1278 = vunpack.c.l.b16 %v1239
        %v1279 = vpack.c.b16 %v1264, %v1263
        %v1280 = vpack.c.b16 %v1266, %v1265
        %v1281 = vpack.c.b16 %v1268, %v1267
        %v1282 = vpack.c.b16 %v1270, %v1269
        %v1283 = vpack.c.b16 %v1272, %v1271
        %v1284 = vpack.c.b16 %v1274, %v1273
        %v1285 = vpack.c.b16 %v1276, %v1275
        %v1286 = vpack.c.b16 %v1278, %v1277
        %1295 = vmatprep.subr.bf16.mxu0 0
        %1296 = vmatpush1.bf16.msra.mxu0 %v1279
        %1297 = vmatprep.subr.bf16.mxu0 0
        %1298 = vmatpush1.bf16.msra.mxu0 %v1280
        %1299 = vmatprep.subr.bf16.mxu0 0
        %1300 = vmatpush1.bf16.msra.mxu0 %v1281
        %1301 = vmatprep.subr.bf16.mxu0 0
        %1302 = vmatpush1.bf16.msra.mxu0 %v1282
        %1303 = vmatprep.subr.bf16.mxu0 0
        %1304 = vmatpush1.bf16.msra.mxu0 %v1283
        %1305 = vmatprep.subr.bf16.mxu0 0
        %1306 = vmatpush1.bf16.msra.mxu0 %v1284
        %1307 = vmatprep.subr.bf16.mxu0 0
        %1308 = vmatpush1.bf16.msra.mxu0 %v1285
        %1309 = vmatprep.subr.bf16.mxu0 0
        %1310 = vmatpush1.bf16.msra.mxu0 %v1286
        %1311 = vmatprep.subr.bf16.mxu0 0
        %1312 = vmatpush1.bf16.msra.mxu0 0
        %1313 = vmatprep.subr.bf16.mxu0 0
        %1314 = vmatpush1.bf16.msra.mxu0 0
        %1315 = vmatprep.subr.bf16.mxu0 0
        %1316 = vmatpush1.bf16.msra.mxu0 0
        %1317 = vmatprep.subr.bf16.mxu0 0
        %1318 = vmatpush1.bf16.msra.mxu0 0
        %1319 = vmatprep.subr.bf16.mxu0 0
        %1320 = vmatpush1.bf16.msra.mxu0 0
        %1321 = vmatprep.subr.bf16.mxu0 0
        %1322 = vmatpush1.bf16.msra.mxu0 0
        %1323 = vmatprep.subr.bf16.mxu0 0
        %1324 = vmatpush1.bf16.msra.mxu0 0
        %1325 = vmatprep.subr.bf16.mxu0 0
        %1326 = vmatpush1.bf16.msra.mxu0 0
        %1327 = vmatprep.mubr.bf16.mxu0 0
        %1328 = vmatmul.mubr.bf16.gmra.mrb[0].mxu0 %v1223
        %v1329 = vpop.f32.mrb[0].mxu0
        %v1330 = vadd.f32 %v1245, %v1329
        %v1331 = vpop.f32.mrb[0].mxu0
        %v1332 = vpop.f32.mrb[0].mxu0
        %v1333 = vadd.f32 %v1245, %v1332
        %v1334 = vpop.f32.mrb[0].mxu0
        %1335 = vdwg.mxu0
        %v1336 = vadd.f32 %v1143, %v1330
        %v1337 = vadd.f32 %v1144, %v1333
        %v1338 = vld [vmem:[%s11] sm:$0x1]
        %v1339 = vld [vmem:[%s12] sm:$0x1]
        %v1340 = vsel %vm472, %v1336, 0.0
        %1341 = vadd.xlane.f32.xlu0 %v1340
        %v1342 = vpop.xlane.xlu0 %1341
        %v1343 = vsel %vm472, %v1337, 0.0
        %1344 = vadd.xlane.f32.xlu0 %v1343
        %v1345 = vpop.xlane.xlu0 %1344
        %v1346 = vmul.f32 %v1342, %v1108
        %v1347 = vmul.f32 %v1345, %v1108
        %v1348 = vsub.f32 %v1336, %v1346
        %v1349 = vsub.f32 %v1337, %v1347
        %v1350 = vmul.f32 %v1348, %v1348
        %v1351 = vmul.f32 %v1349, %v1349
        %v1352 = vsel %vm472, %v1350, 0.0
        %1353 = vadd.xlane.f32.xlu0 %v1352
        %v1354 = vpop.xlane.xlu0 %1353
        %v1355 = vsel %vm472, %v1351, 0.0
        %1356 = vadd.xlane.f32.xlu0 %v1355
        %v1357 = vpop.xlane.xlu0 %1356
        %v1358 = vmul.f32 %v1354, %v1108
        %v1359 = vmul.f32 %v1357, %v1108
        %v1360 = vadd.f32 %v1358, 1e-05
        %v1361 = vadd.f32 %v1359, 1e-05
        %v1362 = vrsqrt.pop %v1360
        %v1363 = vrsqrt.pop %v1361
        %v1364 = vmul.f32 %v1348, %v1362
        %v1365 = vmul.f32 %v1349, %v1363
        %v1367 = vlaneseq
        %v1368 = vshrl.u32 %v1367, 7
        %v1369 = vsub.s32 0, %v1368
        %v1370 = vrot.slane %v1338, %v1369
        %v1372 = vmul.f32 %v1364, %v1370
        %v1373 = vmul.f32 %v1365, %v1370
        %v1375 = vlaneseq
        %v1376 = vshrl.u32 %v1375, 7
        %v1377 = vsub.s32 0, %v1376
        %v1378 = vrot.slane %v1339, %v1377
        %v1380 = vadd.f32 %v1372, %v1378
        %v1381 = vadd.f32 %v1373, %v1378
        %1382 = vst.msk [vmem:[%s433] sm:$0xff] %vm472, %v1380
        %1383 = vst.msk [vmem:[%s433 + $0x8] sm:$0xff] %vm472, %v1381
        %s1384 = sand.u32 %s313, 1
        %s1385 = scalar_lea.sflag [#allocation4], %s1384
        %s1386 = sand.u32 %s313, 1
        %s1387 = smul.addr %s1386, 16
        %s1388 = scalar_lea.vmem [#allocation3], %s1387
        // Predicated region
        $region73: #{tpu_custom_call.1} parent=71 // pred_check
          %p1389 = pneg %p323
        $region74: #{tpu_custom_call.1} parent=71 // pred_check_branch
          %1391 = sbr.rel (%p1389) target = $region76
        $region75: #{tpu_custom_call.1} parent=71 // pred_region
          %s1393 = ssub.s32 256, 256
          %1394 = vsyncadd %s1385, %s1393
          %s1395 = smul.addr %s27, 2
          %s1396 = smul.addr %s1395, 128
          %s1397 = scalar_lea.hbm %s13, %s1396
          %s1398 = sshll.u32 %s1388, 4
          %s1399 = int_to_ptr.vmem [resolvable:$true] %s1398
          %1404 = dma.vmem_to_hbm [thread:$0]  %s1399, 256, %s1397, %s1385, 128, 128, 8
        $region76: #{tpu_custom_call.1} parent=71 // pred_fallthru
          _
      $region72: #{tpu_custom_call.1} parent=5 // pred_fallthru
        _
      %p1405 = scmp.le.s32.totalorder 2, %s22
      // Predicated region
      $region77: #{tpu_custom_call.1} parent=5 // pred_check
        %p1406 = pneg %p1405
      $region78: #{tpu_custom_call.1} parent=5 // pred_check_branch
        %1408 = sbr.rel (%p1406) target = $region80
      $region79: #{tpu_custom_call.1} parent=5 // pred_region
        %s1409 = ssub.s32 %s22, 2
        // Predicated region
        $region81: #{tpu_custom_call.1} parent=79 // pred_check
          %p1410 = pneg %p329
        $region82: #{tpu_custom_call.1} parent=79 // pred_check_branch
          %1412 = sbr.rel (%p1410) target = $region84
        $region83: #{tpu_custom_call.1} parent=79 // pred_region
          %s1413 = sand.u32 %s314, 1
          %s1414 = scalar_lea.sflag [#allocation4], %s1413
          %s1415 = sand.u32 %s314, 1
          %s1416 = smul.addr %s1415, 16
          %s1417 = scalar_lea.vmem [#allocation3], %s1416
          %1418 = dma.done %s1414, 256
        $region84: #{tpu_custom_call.1} parent=79 // pred_fallthru
          _
      $region80: #{tpu_custom_call.1} parent=5 // pred_fallthru
        _
    $region6: #{tpu_custom_call.1} parent=1 // loop_footer
      %s26 = sadd.s32 1, %s22
    $region7: #{tpu_custom_call.1} parent=1 // loop_footer_branch
      %21 = sbr.rel target = $region3
    $region8: #{tpu_custom_call.1} parent=1 // loop_exit
      _
    %1419 = vsyncpa [#allocation4], 1
    %s1420 = scalar_lea.sflag [#allocation4], 1
    %1421 = vsyncpa %s1420, 1

</llo_original>
